<compile_context>
chip_gen: v5e
topology: v5e:2x2
jax: 0.10.0
libtpu: 0.0.40
codegen_flags: <defaults>
</compile_context>

<pallas_src>
import math
import functools

import jax
import jax.numpy as jnp
from jax.experimental import pallas as pl
from jax.experimental.pallas import tpu as pltpu
from jax.scipy.linalg import block_diag


def cmfa_kernel(heads, hid,
                x_ref,
                w1_ref, w2_ref, w3_ref, w4_ref, w5_ref,
                b_h2_ref, b_h6_ref,
                out_ref):
    f32 = jnp.float32
    bf16 = jnp.bfloat16
    H = hid
    S = x_ref.shape[0]
    dh = H // heads

    b_h2 = b_h2_ref[...]   # (3, 2H) f32: rows [b_in, b_outproj, b_final]
    b_h6 = b_h6_ref[...]   # (2, 6H) f32: rows [b_convqkv, b_attn_inproj]

    # stage 1: fused input projections [fi1 | ft1] + relu -> (S, 2H) = [i_ | t_]
    act1 = jnp.dot(x_ref[...].astype(bf16), w1_ref[...],
                   preferred_element_type=f32) + b_h2[0:1, :]
    act1 = jnp.maximum(act1, 0.0)

    # stage 2: fused "conv" q/k/v projections + relu
    #   -> (S, 6H) = [v1 | k1 | q1 | v2 | k2 | q2]
    qkv = jnp.dot(act1.astype(bf16), w2_ref[...],
                  preferred_element_type=f32) + b_h6[0:1, :]
    qkv = jnp.maximum(qkv, 0.0)

    # stage 3: both MHA in-projections as one permuted-block matmul
    # (query scale folded in) -> (S, 6H) = [qV | qT | kV | kT | vV | vT],
    # each H block head-major.
    proj = jnp.dot(qkv.astype(bf16), w3_ref[...],
                   preferred_element_type=f32) + b_h6[1:2, :]

    # stage 4: attention, batched over g = (path, head) = 2*heads groups.
    g = 2 * heads
    proj3 = proj.reshape(S, 3 * g, dh).astype(bf16)   # (S, 3*2*heads, dh)
    q = proj3[:, 0 * g:1 * g]                         # (S, g, dh)  scaled q
    k = proj3[:, 1 * g:2 * g]
    v = proj3[:, 2 * g:3 * g]

    s = jnp.einsum("qgd,kgd->gqk", q, k, preferred_element_type=f32)
    s = s - jnp.max(s, axis=-1, keepdims=True)
    p = jnp.exp(s)
    p = p * pl.reciprocal(jnp.sum(p, axis=-1, keepdims=True), approx=True)
    o = jnp.einsum("gqk,kgd->qgd", p.astype(bf16), v,
                   preferred_element_type=f32)        # (S, g, dh)

    # head-merge + path-concat folded into the block-diag out-projection:
    # o lanes are [attn_V heads | attn_T heads] -> (S, 2H).
    attn = jnp.dot(o.reshape(S, 2 * H).astype(bf16), w4_ref[...],
                   preferred_element_type=f32) + b_h2[1:2, :]

    # stage 5: residual ([i_ | t_]) + fused final projections.
    # Output lanes are [V_ | T_] == torch.cat((V_, T_), 1).
    y = jnp.dot((attn + act1).astype(bf16), w5_ref[...],
                preferred_element_type=f32) + b_h2[2:3, :]
    out_ref[...] = y.astype(out_ref.dtype)


def pack_params(params, heads):
    """Wrapper-side packing of the 36 raw tensors into 7 slabs (bf16 weights)."""
    p = params
    H = p["wfi1"].shape[1]
    dh = H // heads
    scale = 1.0 / math.sqrt(dh)
    bf16 = jnp.bfloat16

    # stage 1: block-diag over modalities.
    w1 = block_diag(p["wfi1"], p["wft1"]).astype(bf16)                    # (Din, 2H)
    b1 = jnp.concatenate([p["bfi1"], p["bft1"]], axis=1)                  # (1, 2H)

    # stage 2: per-path fused conv q/k/v, then block-diag over modalities.
    w2 = block_diag(
        jnp.concatenate([p["wci1"], p["wci2"], p["wci3"]], axis=1),       # i: [v1|k1|q1]
        jnp.concatenate([p["wct1"], p["wct2"], p["wct3"]], axis=1),       # t: [v2|k2|q2]
    ).astype(bf16)                                                        # (2H, 6H)
    b2 = jnp.concatenate([p["bci1"], p["bci2"], p["bci3"],
                          p["bct1"], p["bct2"], p["bct3"]], axis=1)       # (1, 6H)

    # stage 3: both MHA in-projections as a single permuted-block (6H, 6H) matmul.
    #   input rows : [v1 | k1 | q1 | v2 | k2 | q2]
    #   output cols: [qV | qT | kV | kT | vV | vT]   (query scale folded in)
    w3 = jnp.zeros((6 * H, 6 * H), jnp.float32)
    blocks = [  # (row_block, col_block, weight)
        (5, 0, p["vq_w"] * scale),   # q2 -> qV   (self_attn_V query)
        (2, 1, p["tq_w"] * scale),   # q1 -> qT   (self_attn_T query)
        (1, 2, p["vk_w"]),           # k1 -> kV
        (4, 3, p["tk_w"]),           # k2 -> kT
        (0, 4, p["vv_w"]),           # v1 -> vV
        (3, 5, p["tv_w"]),           # v2 -> vT
    ]
    for r, c, w in blocks:
        w3 = w3.at[r * H:(r + 1) * H, c * H:(c + 1) * H].set(w)
    w3 = w3.astype(bf16)                                                  # (6H, 6H)
    b3 = jnp.concatenate([p["vq_b"] * scale, p["tq_b"] * scale,
                          p["vk_b"], p["tk_b"], p["vv_b"], p["tv_b"]], axis=1)  # (1, 6H)

    # stage 4: block-diag attention out-projections.
    w4 = block_diag(p["vo_w"], p["to_w"]).astype(bf16)                    # (2H, 2H)
    b4 = jnp.concatenate([p["vo_b"], p["to_b"]], axis=1)                  # (1, 2H)

    # stage 5: block-diag final projections (fi2 | ft2).
    w5 = block_diag(p["wfi2"], p["wft2"]).astype(bf16)                    # (2H, 2H)
    b5 = jnp.concatenate([p["bfi2"], p["bft2"]], axis=1)                  # (1, 2H)

    b_h2 = jnp.concatenate([b1, b4, b5], axis=0)                          # (3, 2H) f32
    b_h6 = jnp.concatenate([b2, b3], axis=0)                              # (2, 6H) f32
    return w1, w2, w3, w4, w5, b_h2, b_h6


def cmfa_forward(i, t, params, heads=4):
    S = i.shape[0]
    hid = params["wfi1"].shape[1]
    x = jnp.concatenate([i, t], axis=1)   # (S, img_dim + tab_dim), tiny
    args = (x,) + pack_params(params, heads)
    vmem = lambda: pl.BlockSpec(memory_space=pltpu.MemorySpace.VMEM)
    # Gridless: the whole (tiny) problem lives in VMEM in a single invocation.
    # TODO(synk): when running many (i, t) sequences / large S, add a leading
    # "parallel" grid axis (batch or query tiles) so v7x's 2 TensorCores are
    # both used, keep the 7 packed slabs VMEM-resident via constant-index
    # weight BlockSpecs, and switch the attention to KV-tiled online softmax
    # with tile sizes re-derived for v7x's 64 MiB VMEM.
    return pl.pallas_call(
        functools.partial(cmfa_kernel, heads, hid),
        out_shape=jax.ShapeDtypeStruct((S, 2 * hid), jnp.float32),
        in_specs=[vmem() for _ in args],
        out_specs=vmem(),
    )(*args)


def _linear_params(key, fan_in, fan_out):
    kw, kb = jax.random.split(key)
    bound = 1.0 / math.sqrt(fan_in)
    w = jax.random.uniform(kw, (fan_in, fan_out), jnp.float32, -bound, bound)
    b = jax.random.uniform(kb, (1, fan_out), jnp.float32, -bound, bound)
    return w, b


def init_params(key, img_dim, tab_dim, hid):
    specs = {
        "fi1": (img_dim, hid), "ft1": (tab_dim, hid),
        "ci1": (hid, hid), "ci2": (hid, hid), "ci3": (hid, hid),
        "ct1": (hid, hid), "ct2": (hid, hid), "ct3": (hid, hid),
        "vq": (hid, hid), "vk": (hid, hid), "vv": (hid, hid), "vo": (hid, hid),
        "tq": (hid, hid), "tk": (hid, hid), "tv": (hid, hid), "to": (hid, hid),
        "fi2": (hid, hid), "ft2": (hid, hid),
    }
    keys = jax.random.split(key, len(specs))
    p = {}
    for k_rng, (name, (fi, fo)) in zip(keys, specs.items()):
        w, b = _linear_params(k_rng, fi, fo)
        if name.startswith(("f", "c")):
            p["w" + name] = w
            p["b" + name] = b
        else:
            p[name + "_w"] = w
            p[name + "_b"] = b
    return p


def cmfa_reference(i, t, params, heads=4):
    """Independent pure-JAX reference mirroring the PyTorch forward (eval mode):
    unfused weights, per-head loop, explicit scale, exact softmax division, f32."""
    p = params
    lin = lambda x, w, b: x @ w + b
    relu = lambda x: jnp.maximum(x, 0.0)

    def mha(q, k, v, wq, bq, wk, bk, wv, bv, wo, bo):
        S, E = q.shape
        dh = E // heads
        scale = 1.0 / math.sqrt(dh)
        qp, kp, vp = lin(q, wq, bq), lin(k, wk, bk), lin(v, wv, bv)
        outs = []
        for h in range(heads):
            sl = slice(h * dh, (h + 1) * dh)
            s = (qp[:, sl] * scale) @ kp[:, sl].T
            a = jax.nn.softmax(s, axis=-1)
            outs.append(a @ vp[:, sl])
        return lin(jnp.concatenate(outs, axis=-1), wo, bo)

    i_ = relu(lin(i, p["wfi1"], p["bfi1"]))
    t_ = relu(lin(t, p["wft1"], p["bft1"]))
    v1 = relu(lin(i_, p["wci1"], p["bci1"]))
    k1 = relu(lin(i_, p["wci2"], p["bci2"]))
    q1 = relu(lin(i_, p["wci3"], p["bci3"]))
    v2 = relu(lin(t_, p["wct1"], p["bct1"]))
    k2 = relu(lin(t_, p["wct2"], p["bct2"]))
    q2 = relu(lin(t_, p["wct3"], p["bct3"]))
    V_ = mha(q2, k1, v1, p["vq_w"], p["vq_b"], p["vk_w"], p["vk_b"],
             p["vv_w"], p["vv_b"], p["vo_w"], p["vo_b"])
    T_ = mha(q1, k2, v2, p["tq_w"], p["tq_b"], p["tk_w"], p["tk_b"],
             p["tv_w"], p["tv_b"], p["to_w"], p["to_b"])
    V_ = lin(V_ + i_, p["wfi2"], p["bfi2"])
    T_ = lin(T_ + t_, p["wft2"], p["bft2"])
    return jnp.concatenate([V_, T_], axis=1)


if __name__ == "__main__":
    S, IMG_DIM, TAB_DIM, HID, HEADS = 8, 16, 12, 32, 4

    key = jax.random.PRNGKey(0)
    k_i, k_t, k_p = jax.random.split(key, 3)
    i = jax.random.normal(k_i, (S, IMG_DIM), jnp.float32)
    t = jax.random.normal(k_t, (S, TAB_DIM), jnp.float32)
    params = init_params(k_p, IMG_DIM, TAB_DIM, HID)

    out = cmfa_forward(i, t, params, heads=HEADS)
    out = jax.block_until_ready(out)

    ref = cmfa_reference(i, t, params, heads=HEADS)
    assert out.shape == (S, 2 * HID), out.shape
    # Tolerance accounts for bf16 MXU operands + approx softmax reciprocal
    # (f32 accumulation / elementwise throughout).
    assert jnp.allclose(out, ref, rtol=5e-2, atol=5e-2), "mismatch vs reference"

    print("KERNEL_OK")
</pallas_src>

<mosaic_0001>
module attributes {stable_mosaic.version = 11 : i64} {
  func.func @cmfa_kernel(%arg0: memref<8x28xf32, #tpu.memory_space<vmem>>, %arg1: memref<28x64xbf16, #tpu.memory_space<vmem>>, %arg2: memref<64x192xbf16, #tpu.memory_space<vmem>>, %arg3: memref<192x192xbf16, #tpu.memory_space<vmem>>, %arg4: memref<64x64xbf16, #tpu.memory_space<vmem>>, %arg5: memref<64x64xbf16, #tpu.memory_space<vmem>>, %arg6: memref<3x64xf32, #tpu.memory_space<vmem>>, %arg7: memref<2x192xf32, #tpu.memory_space<vmem>>, %arg8: memref<8x64xf32, #tpu.memory_space<vmem>>) attributes {dimension_semantics = [], scalar_prefetch = 0 : i64, scratch_operands = 0 : i64, tpu.core_type = #tpu.core_type<tc>} {
    %c0 = arith.constant 0 : index
    %c0_0 = arith.constant 0 : index
    %0 = vector.load %arg6[%c0, %c0_0] : memref<3x64xf32, #tpu.memory_space<vmem>>, vector<3x64xf32>
    %c0_1 = arith.constant 0 : index
    %c0_2 = arith.constant 0 : index
    %1 = vector.load %arg7[%c0_1, %c0_2] : memref<2x192xf32, #tpu.memory_space<vmem>>, vector<2x192xf32>
    %c0_3 = arith.constant 0 : index
    %c0_4 = arith.constant 0 : index
    %2 = vector.load %arg0[%c0_3, %c0_4] : memref<8x28xf32, #tpu.memory_space<vmem>>, vector<8x28xf32>
    %3 = arith.truncf %2 : vector<8x28xf32> to vector<8x28xbf16>
    %c0_5 = arith.constant 0 : index
    %c0_6 = arith.constant 0 : index
    %4 = vector.load %arg1[%c0_5, %c0_6] : memref<28x64xbf16, #tpu.memory_space<vmem>>, vector<28x64xbf16>
    %cst = arith.constant dense<0.000000e+00> : vector<8x64xf32>
    %5 = tpu.matmul %3, %4, %cst {dimension_numbers = #tpu.dot_dimension_numbers<[1], [0], [0], [1], [0, 0, 1, 1], [], []>} : vector<8x28xbf16>, vector<28x64xbf16>, vector<8x64xf32> -> vector<8x64xf32>
    %6 = vector.extract_strided_slice %0 {offsets = [0, 0], sizes = [1, 64], strides = [1, 1]} : vector<3x64xf32> to vector<1x64xf32>
    %7 = vector.broadcast %6 : vector<1x64xf32> to vector<8x64xf32>
    %8 = arith.addf %5, %7 : vector<8x64xf32>
    %cst_7 = arith.constant 0.000000e+00 : f32
    %9 = vector.broadcast %cst_7 : f32 to vector<8x64xf32>
    %10 = arith.maximumf %8, %9 : vector<8x64xf32>
    %11 = arith.truncf %10 : vector<8x64xf32> to vector<8x64xbf16>
    %c0_8 = arith.constant 0 : index
    %c0_9 = arith.constant 0 : index
    %12 = vector.load %arg2[%c0_8, %c0_9] : memref<64x192xbf16, #tpu.memory_space<vmem>>, vector<64x192xbf16>
    %cst_10 = arith.constant dense<0.000000e+00> : vector<8x192xf32>
    %13 = tpu.matmul %11, %12, %cst_10 {dimension_numbers = #tpu.dot_dimension_numbers<[1], [0], [0], [1], [0, 0, 1, 1], [], []>} : vector<8x64xbf16>, vector<64x192xbf16>, vector<8x192xf32> -> vector<8x192xf32>
    %14 = vector.extract_strided_slice %1 {offsets = [0, 0], sizes = [1, 192], strides = [1, 1]} : vector<2x192xf32> to vector<1x192xf32>
    %15 = vector.broadcast %14 : vector<1x192xf32> to vector<8x192xf32>
    %16 = arith.addf %13, %15 : vector<8x192xf32>
    %cst_11 = arith.constant 0.000000e+00 : f32
    %17 = vector.broadcast %cst_11 : f32 to vector<8x192xf32>
    %18 = arith.maximumf %16, %17 : vector<8x192xf32>
    %19 = arith.truncf %18 : vector<8x192xf32> to vector<8x192xbf16>
    %c0_12 = arith.constant 0 : index
    %c0_13 = arith.constant 0 : index
    %20 = vector.load %arg3[%c0_12, %c0_13] : memref<192x192xbf16, #tpu.memory_space<vmem>>, vector<192x192xbf16>
    %cst_14 = arith.constant dense<0.000000e+00> : vector<8x192xf32>
    %21 = tpu.matmul %19, %20, %cst_14 {dimension_numbers = #tpu.dot_dimension_numbers<[1], [0], [0], [1], [0, 0, 1, 1], [], []>} : vector<8x192xbf16>, vector<192x192xbf16>, vector<8x192xf32> -> vector<8x192xf32>
    %22 = vector.extract_strided_slice %1 {offsets = [1, 0], sizes = [1, 192], strides = [1, 1]} : vector<2x192xf32> to vector<1x192xf32>
    %23 = vector.broadcast %22 : vector<1x192xf32> to vector<8x192xf32>
    %24 = arith.addf %21, %23 : vector<8x192xf32>
    %25 = vector.shape_cast %24 : vector<8x192xf32> to vector<8x24x8xf32>
    %26 = arith.truncf %25 : vector<8x24x8xf32> to vector<8x24x8xbf16>
    %27 = vector.extract_strided_slice %26 {offsets = [0, 0, 0], sizes = [8, 8, 8], strides = [1, 1, 1]} : vector<8x24x8xbf16> to vector<8x8x8xbf16>
    %28 = vector.extract_strided_slice %26 {offsets = [0, 8, 0], sizes = [8, 8, 8], strides = [1, 1, 1]} : vector<8x24x8xbf16> to vector<8x8x8xbf16>
    %29 = vector.extract_strided_slice %26 {offsets = [0, 16, 0], sizes = [8, 8, 8], strides = [1, 1, 1]} : vector<8x24x8xbf16> to vector<8x8x8xbf16>
    "tpu.trace_start"() <{level = 10 : i32, message = "qgd,kgd->gqk"}> : () -> ()
    %cst_15 = arith.constant dense<0.000000e+00> : vector<8x8x8xf32>
    %30 = tpu.matmul %27, %28, %cst_15 {dimension_numbers = #tpu.dot_dimension_numbers<[2], [2], [0], [0], [0, 1, 0, 0, 1, 0], [1], [1]>} : vector<8x8x8xbf16>, vector<8x8x8xbf16>, vector<8x8x8xf32> -> vector<8x8x8xf32>
    "tpu.trace_stop"() : () -> ()
    %cst_16 = arith.constant dense<0xFF800000> : vector<8x8xf32>
    %31 = vector.multi_reduction <maximumf>, %30, %cst_16 [2] : vector<8x8x8xf32> to vector<8x8xf32>
    %32 = vector.shape_cast %31 : vector<8x8xf32> to vector<8x8x1xf32>
    %33 = vector.broadcast %32 : vector<8x8x1xf32> to vector<8x8x8xf32>
    %34 = arith.subf %30, %33 : vector<8x8x8xf32>
    %35 = math.exp %34 : vector<8x8x8xf32>
    %cst_17 = arith.constant dense<0.000000e+00> : vector<8x8xf32>
    %36 = vector.multi_reduction <add>, %35, %cst_17 [2] : vector<8x8x8xf32> to vector<8x8xf32>
    %37 = vector.shape_cast %36 : vector<8x8xf32> to vector<8x8x1xf32>
    %38 = tpu.reciprocal %37 {approx = true} : vector<8x8x1xf32> -> vector<8x8x1xf32>
    %39 = vector.broadcast %38 : vector<8x8x1xf32> to vector<8x8x8xf32>
    %40 = arith.mulf %35, %39 : vector<8x8x8xf32>
    %41 = arith.truncf %40 : vector<8x8x8xf32> to vector<8x8x8xbf16>
    "tpu.trace_start"() <{level = 10 : i32, message = "gqk,kgd->qgd"}> : () -> ()
    %cst_18 = arith.constant dense<0.000000e+00> : vector<8x8x8xf32>
    %42 = tpu.matmul %29, %41, %cst_18 {dimension_numbers = #tpu.dot_dimension_numbers<[0], [2], [2], [1], [0, 1, 0, 2, 1, 1], [1], [0]>} : vector<8x8x8xbf16>, vector<8x8x8xbf16>, vector<8x8x8xf32> -> vector<8x8x8xf32>
    %43 = tpu.transpose %42, [2, 0, 1] : vector<8x8x8xf32> -> vector<8x8x8xf32>
    "tpu.trace_stop"() : () -> ()
    %44 = vector.shape_cast %43 : vector<8x8x8xf32> to vector<8x64xf32>
    %45 = arith.truncf %44 : vector<8x64xf32> to vector<8x64xbf16>
    %c0_19 = arith.constant 0 : index
    %c0_20 = arith.constant 0 : index
    %46 = vector.load %arg4[%c0_19, %c0_20] : memref<64x64xbf16, #tpu.memory_space<vmem>>, vector<64x64xbf16>
    %cst_21 = arith.constant dense<0.000000e+00> : vector<8x64xf32>
    %47 = tpu.matmul %45, %46, %cst_21 {dimension_numbers = #tpu.dot_dimension_numbers<[1], [0], [0], [1], [0, 0, 1, 1], [], []>} : vector<8x64xbf16>, vector<64x64xbf16>, vector<8x64xf32> -> vector<8x64xf32>
    %48 = vector.extract_strided_slice %0 {offsets = [1, 0], sizes = [1, 64], strides = [1, 1]} : vector<3x64xf32> to vector<1x64xf32>
    %49 = vector.broadcast %48 : vector<1x64xf32> to vector<8x64xf32>
    %50 = arith.addf %47, %49 : vector<8x64xf32>
    %51 = arith.addf %50, %10 : vector<8x64xf32>
    %52 = arith.truncf %51 : vector<8x64xf32> to vector<8x64xbf16>
    %c0_22 = arith.constant 0 : index
    %c0_23 = arith.constant 0 : index
    %53 = vector.load %arg5[%c0_22, %c0_23] : memref<64x64xbf16, #tpu.memory_space<vmem>>, vector<64x64xbf16>
    %cst_24 = arith.constant dense<0.000000e+00> : vector<8x64xf32>
    %54 = tpu.matmul %52, %53, %cst_24 {dimension_numbers = #tpu.dot_dimension_numbers<[1], [0], [0], [1], [0, 0, 1, 1], [], []>} : vector<8x64xbf16>, vector<64x64xbf16>, vector<8x64xf32> -> vector<8x64xf32>
    %55 = vector.extract_strided_slice %0 {offsets = [2, 0], sizes = [1, 64], strides = [1, 1]} : vector<3x64xf32> to vector<1x64xf32>
    %56 = vector.broadcast %55 : vector<1x64xf32> to vector<8x64xf32>
    %57 = arith.addf %54, %56 : vector<8x64xf32>
    %c0_25 = arith.constant 0 : index
    %c0_26 = arith.constant 0 : index
    %58 = vector.load %arg8[%c0_25, %c0_26] : memref<8x64xf32, #tpu.memory_space<vmem>>, vector<8x64xf32>
    tpu.vector_store %arg8[%c0_25, %c0_26], %57 {strides = array<i32>} : memref<8x64xf32, #tpu.memory_space<vmem>>, vector<8x64xf32>,
    return
  }
}

</mosaic_0001>

<llo_original>
// kernel: tpu_custom_call.1
$region0: #{tpu_custom_call.1}
  #allocation0 [shape = 'u32[]', space=smem, size = 0x4, offset = 0x4, fixed_abs, tag = 'smem constant byte address 0x4 - core index']
  #allocation1 [shape = 'u32[72,128]{1,0:T(1,128)}', space=vmem, size = 0x9000, scoped, tag = 'internal scratch']
  %s0 = inlined_call_operand.hbm [shape: f32[8,28], index: 0, kind: input, shape index: {}]
  %s1 = inlined_call_operand.hbm [shape: bf16[28,64], index: 1, kind: input, shape index: {}]
  %s2 = inlined_call_operand.hbm [shape: bf16[64,192], index: 2, kind: input, shape index: {}]
  %s3 = inlined_call_operand.hbm [shape: bf16[192,192], index: 3, kind: input, shape index: {}]
  %s4 = inlined_call_operand.hbm [shape: bf16[64,64], index: 4, kind: input, shape index: {}]
  %s5 = inlined_call_operand.hbm [shape: bf16[64,64], index: 5, kind: input, shape index: {}]
  %s6 = inlined_call_operand.vmem [shape: f32[3,64], index: 6, kind: input, shape index: {}]
  %s7 = inlined_call_operand.hbm [shape: f32[2,192], index: 7, kind: input, shape index: {}]
  %s8 = inlined_call_operand.hbm [shape: f32[8,64], index: 8, kind: output, shape index: {}]
  %s9 = sld [smem:[#allocation0]]
  $region70: #{tpu_custom_call.1} parent=0
    _
  %s11 = ssub.s32 1, %s9
  %s12 = scalar_select 0, %s11, %s9
  $region1: #{tpu_custom_call.1} parent=0
    #allocation2 [shape = 'u8[4096]{0}', space=vmem, size = 0x1000, scoped, tag = 'input window, operand 0, single buffered']
    #allocation3 [shape = 's32[1]{0}', space=sflag, size = 0x4, scoped, tag = 'scoped memory for tpu_custom_call.1']
    #allocation4 [shape = 's32[1]{0}', space=sflag, size = 0x4, scoped, tag = 'scoped memory for tpu_custom_call.1']
    #allocation5 [shape = 'u8[8192]{0}', space=vmem, size = 0x2000, scoped, tag = 'input window, operand 1, single buffered']
    #allocation6 [shape = 's32[1]{0}', space=sflag, size = 0x4, scoped, tag = 'scoped memory for tpu_custom_call.1']
    #allocation7 [shape = 'u8[32768]{0}', space=vmem, size = 0x8000, scoped, tag = 'input window, operand 2, single buffered']
    #allocation8 [shape = 'u8[98304]{0}', space=vmem, size = 0x18000, scoped, tag = 'input window, operand 3, single buffered']
    #allocation9 [shape = 's32[1]{0}', space=sflag, size = 0x4, scoped, tag = 'scoped memory for tpu_custom_call.1']
    #allocation10 [shape = 'u8[16384]{0}', space=vmem, size = 0x4000, scoped, tag = 'input window, operand 4, single buffered']
    #allocation11 [shape = 'u8[16384]{0}', space=vmem, size = 0x4000, scoped, tag = 'input window, operand 5, single buffered']
    #allocation12 [shape = 's32[1]{0}', space=sflag, size = 0x4, scoped, tag = 'scoped memory for tpu_custom_call.1']
    #allocation13 [shape = 'u8[2048]{0}', space=vmem, size = 0x800, scoped, tag = 'input window, operand 7, single buffered']
    #allocation14 [shape = 'u8[4096]{0}', space=vmem, size = 0x1000, scoped, tag = 'output window, operand 0, single buffered']
    %13 = vsyncpa [#allocation3], 0
    %14 = vsyncpa [#allocation6], 0
    %15 = vsyncpa [#allocation9], 0
    %16 = vsyncpa [#allocation12], 0
    %17 = vsyncpa [#allocation4], 0
    // Predicated region
    $region2: #{tpu_custom_call.1} parent=1 // pred_check
      _
    $region3: #{tpu_custom_call.1} parent=1 // pred_check_branch
      %19 = sbr.rel (0) target = $region5
    $region4: #{tpu_custom_call.1} parent=1 // pred_region
      %21 = vsyncadd [#allocation3], 0
      %s23 = sshll.u32 %s0, 4
      %s24 = int_to_ptr.hbm [resolvable:$true] %s23
      %s25 = sshll.u32 [#allocation2], 4
      %s26 = int_to_ptr.vmem [resolvable:$true] %s25
      %28 = dma.hbm_to_vmem [thread:$0]  %s24, 128, %s26, [#allocation3]
    $region5: #{tpu_custom_call.1} parent=1 // pred_fallthru
      _
    // Predicated region
    $region6: #{tpu_custom_call.1} parent=1 // pred_check
      _
    $region7: #{tpu_custom_call.1} parent=1 // pred_check_branch
      %30 = sbr.rel (0) target = $region9
    $region8: #{tpu_custom_call.1} parent=1 // pred_region
      %32 = vsyncadd [#allocation6], 0
      %s33 = sshll.u32 %s1, 4
      %s34 = int_to_ptr.hbm [resolvable:$true] %s33
      %s35 = sshll.u32 [#allocation5], 4
      %s36 = int_to_ptr.vmem [resolvable:$true] %s35
      %41 = dma.hbm_to_vmem [thread:$0]  %s34, 256, %s36, [#allocation6], 64, 64, 4
    $region9: #{tpu_custom_call.1} parent=1 // pred_fallthru
      _
    // Predicated region
    $region10: #{tpu_custom_call.1} parent=1 // pred_check
      _
    $region11: #{tpu_custom_call.1} parent=1 // pred_check_branch
      %43 = sbr.rel (0) target = $region13
    $region12: #{tpu_custom_call.1} parent=1 // pred_region
      %45 = vsyncadd [#allocation6], 0
      %s46 = sshll.u32 %s2, 4
      %s47 = int_to_ptr.hbm [resolvable:$true] %s46
      %s48 = sshll.u32 [#allocation7], 4
      %s49 = int_to_ptr.vmem [resolvable:$true] %s48
      %54 = dma.hbm_to_vmem [thread:$0]  %s47, 1024, %s49, [#allocation6], 128, 128, 8
    $region13: #{tpu_custom_call.1} parent=1 // pred_fallthru
      _
    // Predicated region
    $region14: #{tpu_custom_call.1} parent=1 // pred_check
      _
    $region15: #{tpu_custom_call.1} parent=1 // pred_check_branch
      %56 = sbr.rel (0) target = $region17
    $region16: #{tpu_custom_call.1} parent=1 // pred_region
      %58 = vsyncadd [#allocation9], 0
      %s59 = sshll.u32 %s3, 4
      %s60 = int_to_ptr.hbm [resolvable:$true] %s59
      %s61 = sshll.u32 [#allocation8], 4
      %s62 = int_to_ptr.vmem [resolvable:$true] %s61
      %67 = dma.hbm_to_vmem [thread:$0]  %s60, 3072, %s62, [#allocation9], 128, 128, 8
    $region17: #{tpu_custom_call.1} parent=1 // pred_fallthru
      _
    // Predicated region
    $region18: #{tpu_custom_call.1} parent=1 // pred_check
      _
    $region19: #{tpu_custom_call.1} parent=1 // pred_check_branch
      %69 = sbr.rel (0) target = $region21
    $region20: #{tpu_custom_call.1} parent=1 // pred_region
      %71 = vsyncadd [#allocation9], 0
      %s72 = sshll.u32 %s4, 4
      %s73 = int_to_ptr.hbm [resolvable:$true] %s72
      %s74 = sshll.u32 [#allocation10], 4
      %s75 = int_to_ptr.vmem [resolvable:$true] %s74
      %80 = dma.hbm_to_vmem [thread:$0]  %s73, 512, %s75, [#allocation9], 64, 64, 4
    $region21: #{tpu_custom_call.1} parent=1 // pred_fallthru
      _
    // Predicated region
    $region22: #{tpu_custom_call.1} parent=1 // pred_check
      _
    $region23: #{tpu_custom_call.1} parent=1 // pred_check_branch
      %82 = sbr.rel (0) target = $region25
    $region24: #{tpu_custom_call.1} parent=1 // pred_region
      %84 = vsyncadd [#allocation12], 0
      %s85 = sshll.u32 %s5, 4
      %s86 = int_to_ptr.hbm [resolvable:$true] %s85
      %s87 = sshll.u32 [#allocation11], 4
      %s88 = int_to_ptr.vmem [resolvable:$true] %s87
      %93 = dma.hbm_to_vmem [thread:$0]  %s86, 512, %s88, [#allocation12], 64, 64, 4
    $region25: #{tpu_custom_call.1} parent=1 // pred_fallthru
      _
    // Predicated region
    $region26: #{tpu_custom_call.1} parent=1 // pred_check
      _
    $region27: #{tpu_custom_call.1} parent=1 // pred_check_branch
      %95 = sbr.rel (0) target = $region29
    $region28: #{tpu_custom_call.1} parent=1 // pred_region
      _
    $region29: #{tpu_custom_call.1} parent=1 // pred_fallthru
      _
    // Predicated region
    $region30: #{tpu_custom_call.1} parent=1 // pred_check
      _
    $region31: #{tpu_custom_call.1} parent=1 // pred_check_branch
      %97 = sbr.rel (0) target = $region33
    $region32: #{tpu_custom_call.1} parent=1 // pred_region
      %99 = vsyncadd [#allocation12], 0
      %s101 = sshll.u32 %s7, 4
      %s102 = int_to_ptr.hbm [resolvable:$true] %s101
      %s103 = sshll.u32 [#allocation13], 4
      %s104 = int_to_ptr.vmem [resolvable:$true] %s103
      %106 = dma.hbm_to_vmem [thread:$0]  %s102, 64, %s104, [#allocation12]
    $region33: #{tpu_custom_call.1} parent=1 // pred_fallthru
      _
    // Predicated region
    $region34: #{tpu_custom_call.1} parent=1 // pred_check
      _
    $region35: #{tpu_custom_call.1} parent=1 // pred_check_branch
      %108 = sbr.rel (0) target = $region37
    $region36: #{tpu_custom_call.1} parent=1 // pred_region
      %110 = dma.done [#allocation3], 128
    $region37: #{tpu_custom_call.1} parent=1 // pred_fallthru
      _
    // Predicated region
    $region38: #{tpu_custom_call.1} parent=1 // pred_check
      _
    $region39: #{tpu_custom_call.1} parent=1 // pred_check_branch
      %112 = sbr.rel (0) target = $region41
    $region40: #{tpu_custom_call.1} parent=1 // pred_region
      %114 = dma.done [#allocation6], 256
    $region41: #{tpu_custom_call.1} parent=1 // pred_fallthru
      _
    // Predicated region
    $region42: #{tpu_custom_call.1} parent=1 // pred_check
      _
    $region43: #{tpu_custom_call.1} parent=1 // pred_check_branch
      %116 = sbr.rel (0) target = $region45
    $region44: #{tpu_custom_call.1} parent=1 // pred_region
      %118 = dma.done [#allocation6], 1024
    $region45: #{tpu_custom_call.1} parent=1 // pred_fallthru
      _
    // Predicated region
    $region46: #{tpu_custom_call.1} parent=1 // pred_check
      _
    $region47: #{tpu_custom_call.1} parent=1 // pred_check_branch
      %120 = sbr.rel (0) target = $region49
    $region48: #{tpu_custom_call.1} parent=1 // pred_region
      %122 = dma.done [#allocation9], 3072
    $region49: #{tpu_custom_call.1} parent=1 // pred_fallthru
      _
    // Predicated region
    $region50: #{tpu_custom_call.1} parent=1 // pred_check
      _
    $region51: #{tpu_custom_call.1} parent=1 // pred_check_branch
      %124 = sbr.rel (0) target = $region53
    $region52: #{tpu_custom_call.1} parent=1 // pred_region
      %126 = dma.done [#allocation9], 512
    $region53: #{tpu_custom_call.1} parent=1 // pred_fallthru
      _
    // Predicated region
    $region54: #{tpu_custom_call.1} parent=1 // pred_check
      _
    $region55: #{tpu_custom_call.1} parent=1 // pred_check_branch
      %128 = sbr.rel (0) target = $region57
    $region56: #{tpu_custom_call.1} parent=1 // pred_region
      %130 = dma.done [#allocation12], 512
    $region57: #{tpu_custom_call.1} parent=1 // pred_fallthru
      _
    // Predicated region
    $region58: #{tpu_custom_call.1} parent=1 // pred_check
      _
    $region59: #{tpu_custom_call.1} parent=1 // pred_check_branch
      %132 = sbr.rel (0) target = $region61
    $region60: #{tpu_custom_call.1} parent=1 // pred_region
      %134 = dma.done [#allocation12], 64
    $region61: #{tpu_custom_call.1} parent=1 // pred_fallthru
      _
    %v136 = vld [vmem:[%s6] sm:$0x7]
    %v137 = vld [vmem:[#allocation13] sm:$0xf]
    %v138 = vld [vmem:[#allocation2] sm:$0xff]
    %v139 = vpack.c.bf16 %v138, %v138
    %v140 = vld [vmem:[#allocation5] sm:$0xf]
    %v141 = vld [vmem:[#allocation5 + $0x4] sm:$0xf]
    %v142 = vld [vmem:[#allocation5 + $0x8] sm:$0xf]
    %v143 = vld [vmem:[#allocation5 + $0xc] sm:$0x3]
    %v144 = vperm.slane %v136, 0
    %v149 = vunpack.c.l.b16 %v140
    %v150 = vunpack.c.l.b16 %v141
    %v151 = vunpack.c.l.b16 %v142
    %v152 = vunpack.c.l.b16 %v143
    %v153 = vpack.c.b16 %v150, %v149
    %v154 = vpack.c.b16 %v152, %v151
    %vm156 = vcmask 228352
    %v158 = vsel %vm156, %v139, 0
    %vm160 = vcmask 1045504
    %v162 = vsel %vm160, %v154, 0
    %164 = vmatpush.bf16.msra.mxu0 0
    %165 = vmatpush.bf16.msra.mxu0 0
    %166 = vmatpush.bf16.msra.mxu0 0
    %167 = vmatpush.bf16.msra.mxu0 0
    %168 = vmatpush.bf16.msra.mxu0 0
    %169 = vmatpush.bf16.msra.mxu0 0
    %170 = vmatpush.bf16.msra.mxu0 %v162
    %171 = vmatpush.bf16.msra.mxu0 %v153
    %172 = vmatmul.bf16.gmra.mxu0 %v158
    %v173 = vpop.f32.mrf.mxu0
    %v174 = vadd.f32 %v144, %v173
    %v175 = vpop.f32.mrf.mxu0
    %176 = vdwg.mxu0
    %v177 = vmax.f32 %v174, 0.0
    %v178 = vpack.c.bf16 %v177, %v177
    %v179 = vld [vmem:[#allocation7] sm:$0xff]
    %v180 = vld [vmem:[#allocation7 + $0x8] sm:$0xff]
    %v181 = vld [vmem:[#allocation7 + $0x10] sm:$0xff]
    %v182 = vld [vmem:[#allocation7 + $0x18] sm:$0xff]
    %v183 = vld [vmem:[#allocation7 + $0x20] sm:$0xff]
    %v184 = vld [vmem:[#allocation7 + $0x28] sm:$0xff]
    %v185 = vld [vmem:[#allocation7 + $0x30] sm:$0xff]
    %v186 = vld [vmem:[#allocation7 + $0x38] sm:$0xff]
    %v188 = vperm.slane %v137, 0
    %v189 = vperm.slane %v137, 2
    %v192 = vperm.slane %v188, 0
    %v193 = vperm.slane %v189, 0
    %v202 = vunpack.c.l.b16 %v179
    %v203 = vunpack.c.h.b16 %v179
    %v204 = vunpack.c.l.b16 %v180
    %v205 = vunpack.c.h.b16 %v180
    %v206 = vunpack.c.l.b16 %v181
    %v207 = vunpack.c.h.b16 %v181
    %v208 = vunpack.c.l.b16 %v182
    %v209 = vunpack.c.h.b16 %v182
    %v210 = vunpack.c.l.b16 %v183
    %v211 = vunpack.c.h.b16 %v183
    %v212 = vunpack.c.l.b16 %v184
    %v213 = vunpack.c.h.b16 %v184
    %v214 = vunpack.c.l.b16 %v185
    %v215 = vunpack.c.h.b16 %v185
    %v216 = vunpack.c.l.b16 %v186
    %v217 = vunpack.c.h.b16 %v186
    %v218 = vpack.c.b16 %v204, %v202
    %v219 = vpack.c.b16 %v205, %v203
    %v220 = vpack.c.b16 %v208, %v206
    %v221 = vpack.c.b16 %v209, %v207
    %v222 = vpack.c.b16 %v212, %v210
    %v223 = vpack.c.b16 %v213, %v211
    %v224 = vpack.c.b16 %v216, %v214
    %v225 = vpack.c.b16 %v217, %v215
    %vm234 = vcmask 523264
    %v236 = vsel %vm234, %v178, 0
    %238 = vmatpush.bf16.msra.mxu0 0
    %239 = vmatpush.bf16.msra.mxu0 0
    %240 = vmatpush.bf16.msra.mxu0 0
    %241 = vmatpush.bf16.msra.mxu0 0
    %242 = vmatpush.bf16.msra.mxu0 %v224
    %243 = vmatpush.bf16.msra.mxu0 %v222
    %244 = vmatpush.bf16.msra.mxu0 %v220
    %245 = vmatpush.bf16.msra.mxu0 %v218
    %246 = vmatmul.bf16.gmra.mxu0 %v236
    %v247 = vpop.f32.mrf.mxu0
    %v248 = vadd.f32 %v192, %v247
    %v249 = vpop.f32.mrf.mxu0
    %250 = vdwg.mxu0
    %251 = vmatpush.bf16.msra.mxu0 0
    %252 = vmatpush.bf16.msra.mxu0 0
    %253 = vmatpush.bf16.msra.mxu0 0
    %254 = vmatpush.bf16.msra.mxu0 0
    %255 = vmatpush.bf16.msra.mxu0 %v225
    %256 = vmatpush.bf16.msra.mxu0 %v223
    %257 = vmatpush.bf16.msra.mxu0 %v221
    %258 = vmatpush.bf16.msra.mxu0 %v219
    %259 = vmatmul.bf16.gmra.mxu0 %v236
    %v260 = vpop.f32.mrf.mxu0
    %v261 = vadd.f32 %v193, %v260
    %v262 = vpop.f32.mrf.mxu0
    %263 = vdwg.mxu0
    %v264 = vmax.f32 %v248, 0.0
    %v265 = vmax.f32 %v261, 0.0
    %v266 = vpack.c.bf16 %v264, %v264
    %v267 = vpack.c.bf16 %v265, %v265
    %v268 = vld [vmem:[#allocation8] sm:$0xff]
    %v269 = vld [vmem:[#allocation8 + $0x8] sm:$0xff]
    %v270 = vld [vmem:[#allocation8 + $0x10] sm:$0xff]
    %v271 = vld [vmem:[#allocation8 + $0x18] sm:$0xff]
    %v272 = vld [vmem:[#allocation8 + $0x20] sm:$0xff]
    %v273 = vld [vmem:[#allocation8 + $0x28] sm:$0xff]
    %v274 = vld [vmem:[#allocation8 + $0x30] sm:$0xff]
    %v275 = vld [vmem:[#allocation8 + $0x38] sm:$0xff]
    %v276 = vld [vmem:[#allocation8 + $0x40] sm:$0xff]
    %v277 = vld [vmem:[#allocation8 + $0x48] sm:$0xff]
    %v278 = vld [vmem:[#allocation8 + $0x50] sm:$0xff]
    %v279 = vld [vmem:[#allocation8 + $0x58] sm:$0xff]
    %v280 = vld [vmem:[#allocation8 + $0x60] sm:$0xff]
    %v281 = vld [vmem:[#allocation8 + $0x68] sm:$0xff]
    %v282 = vld [vmem:[#allocation8 + $0x70] sm:$0xff]
    %v283 = vld [vmem:[#allocation8 + $0x78] sm:$0xff]
    %v284 = vld [vmem:[#allocation8 + $0x80] sm:$0xff]
    %v285 = vld [vmem:[#allocation8 + $0x88] sm:$0xff]
    %v286 = vld [vmem:[#allocation8 + $0x90] sm:$0xff]
    %v287 = vld [vmem:[#allocation8 + $0x98] sm:$0xff]
    %v288 = vld [vmem:[#allocation8 + $0xa0] sm:$0xff]
    %v289 = vld [vmem:[#allocation8 + $0xa8] sm:$0xff]
    %v290 = vld [vmem:[#allocation8 + $0xb0] sm:$0xff]
    %v291 = vld [vmem:[#allocation8 + $0xb8] sm:$0xff]
    %v292 = vperm.slane %v137, 1
    %v293 = vperm.slane %v137, 3
    %v296 = vperm.slane %v292, 1
    %v297 = vperm.slane %v293, 1
    %v322 = vunpack.c.l.b16 %v268
    %v323 = vunpack.c.h.b16 %v268
    %v324 = vunpack.c.l.b16 %v269
    %v325 = vunpack.c.h.b16 %v269
    %v326 = vunpack.c.l.b16 %v270
    %v327 = vunpack.c.h.b16 %v270
    %v328 = vunpack.c.l.b16 %v271
    %v329 = vunpack.c.h.b16 %v271
    %v330 = vunpack.c.l.b16 %v272
    %v331 = vunpack.c.h.b16 %v272
    %v332 = vunpack.c.l.b16 %v273
    %v333 = vunpack.c.h.b16 %v273
    %v334 = vunpack.c.l.b16 %v274
    %v335 = vunpack.c.h.b16 %v274
    %v336 = vunpack.c.l.b16 %v275
    %v337 = vunpack.c.h.b16 %v275
    %v338 = vunpack.c.l.b16 %v276
    %v339 = vunpack.c.h.b16 %v276
    %v340 = vunpack.c.l.b16 %v277
    %v341 = vunpack.c.h.b16 %v277
    %v342 = vunpack.c.l.b16 %v278
    %v343 = vunpack.c.h.b16 %v278
    %v344 = vunpack.c.l.b16 %v279
    %v345 = vunpack.c.h.b16 %v279
    %v346 = vunpack.c.l.b16 %v280
    %v347 = vunpack.c.h.b16 %v280
    %v348 = vunpack.c.l.b16 %v281
    %v349 = vunpack.c.h.b16 %v281
    %v350 = vunpack.c.l.b16 %v282
    %v351 = vunpack.c.h.b16 %v282
    %v352 = vunpack.c.l.b16 %v283
    %v353 = vunpack.c.h.b16 %v283
    %v354 = vunpack.c.l.b16 %v284
    %v355 = vunpack.c.h.b16 %v284
    %v356 = vunpack.c.l.b16 %v285
    %v357 = vunpack.c.h.b16 %v285
    %v358 = vunpack.c.l.b16 %v286
    %v359 = vunpack.c.h.b16 %v286
    %v360 = vunpack.c.l.b16 %v287
    %v361 = vunpack.c.h.b16 %v287
    %v362 = vunpack.c.l.b16 %v288
    %v363 = vunpack.c.h.b16 %v288
    %v364 = vunpack.c.l.b16 %v289
    %v365 = vunpack.c.h.b16 %v289
    %v366 = vunpack.c.l.b16 %v290
    %v367 = vunpack.c.h.b16 %v290
    %v368 = vunpack.c.l.b16 %v291
    %v369 = vunpack.c.h.b16 %v291
    %v370 = vpack.c.b16 %v324, %v322
    %v371 = vpack.c.b16 %v325, %v323
    %v372 = vpack.c.b16 %v328, %v326
    %v373 = vpack.c.b16 %v329, %v327
    %v374 = vpack.c.b16 %v332, %v330
    %v375 = vpack.c.b16 %v333, %v331
    %v376 = vpack.c.b16 %v336, %v334
    %v377 = vpack.c.b16 %v337, %v335
    %v378 = vpack.c.b16 %v340, %v338
    %v379 = vpack.c.b16 %v341, %v339
    %v380 = vpack.c.b16 %v344, %v342
    %v381 = vpack.c.b16 %v345, %v343
    %v382 = vpack.c.b16 %v348, %v346
    %v383 = vpack.c.b16 %v349, %v347
    %v384 = vpack.c.b16 %v352, %v350
    %v385 = vpack.c.b16 %v353, %v351
    %v386 = vpack.c.b16 %v356, %v354
    %v387 = vpack.c.b16 %v357, %v355
    %v388 = vpack.c.b16 %v360, %v358
    %v389 = vpack.c.b16 %v361, %v359
    %v390 = vpack.c.b16 %v364, %v362
    %v391 = vpack.c.b16 %v365, %v363
    %v392 = vpack.c.b16 %v368, %v366
    %v393 = vpack.c.b16 %v369, %v367
    %v419 = vsel %vm234, %v267, 0
    %421 = vmatpush.bf16.msra.mxu0 %v384
    %422 = vmatpush.bf16.msra.mxu0 %v382
    %423 = vmatpush.bf16.msra.mxu0 %v380
    %424 = vmatpush.bf16.msra.mxu0 %v378
    %425 = vmatpush.bf16.msra.mxu0 %v376
    %426 = vmatpush.bf16.msra.mxu0 %v374
    %427 = vmatpush.bf16.msra.mxu0 %v372
    %428 = vmatpush.bf16.msra.mxu0 %v370
    %429 = vmatmul.bf16.gmra.mxu0 %v266
    %v430 = vpop.f32.mrf.mxu0
    %v431 = vadd.f32 %v296, %v430
    %v432 = vpop.f32.mrf.mxu0
    %433 = vdwg.mxu0
    %434 = vmatpush.bf16.msra.mxu0 0
    %435 = vmatpush.bf16.msra.mxu0 0
    %436 = vmatpush.bf16.msra.mxu0 0
    %437 = vmatpush.bf16.msra.mxu0 0
    %438 = vmatpush.bf16.msra.mxu0 %v392
    %439 = vmatpush.bf16.msra.mxu0 %v390
    %440 = vmatpush.bf16.msra.mxu0 %v388
    %441 = vmatpush.bf16.msra.mxu0 %v386
    %442 = vmatmul.bf16.gmra.mxu0 %v419
    %v443 = vpop.f32.mrf.mxu0
    %v444 = vadd.f32 %v431, %v443
    %v445 = vpop.f32.mrf.mxu0
    %446 = vdwg.mxu0
    %447 = vmatpush.bf16.msra.mxu0 %v385
    %448 = vmatpush.bf16.msra.mxu0 %v383
    %449 = vmatpush.bf16.msra.mxu0 %v381
    %450 = vmatpush.bf16.msra.mxu0 %v379
    %451 = vmatpush.bf16.msra.mxu0 %v377
    %452 = vmatpush.bf16.msra.mxu0 %v375
    %453 = vmatpush.bf16.msra.mxu0 %v373
    %454 = vmatpush.bf16.msra.mxu0 %v371
    %455 = vmatmul.bf16.gmra.mxu0 %v266
    %v456 = vpop.f32.mrf.mxu0
    %v457 = vadd.f32 %v297, %v456
    %v458 = vpop.f32.mrf.mxu0
    %459 = vdwg.mxu0
    %460 = vmatpush.bf16.msra.mxu0 0
    %461 = vmatpush.bf16.msra.mxu0 0
    %462 = vmatpush.bf16.msra.mxu0 0
    %463 = vmatpush.bf16.msra.mxu0 0
    %464 = vmatpush.bf16.msra.mxu0 %v393
    %465 = vmatpush.bf16.msra.mxu0 %v391
    %466 = vmatpush.bf16.msra.mxu0 %v389
    %467 = vmatpush.bf16.msra.mxu0 %v387
    %468 = vmatmul.bf16.gmra.mxu0 %v419
    %v469 = vpop.f32.mrf.mxu0
    %v470 = vadd.f32 %v457, %v469
    %v471 = vpop.f32.mrf.mxu0
    %472 = vdwg.mxu0
    %474 = vrot.lane.b32.xlu0 %v444, 120
    %v475 = vpop.permute.xlu0 %474
    %477 = vrot.lane.b32.xlu0 %v444, 112
    %v478 = vpop.permute.xlu0 %477
    %480 = vrot.lane.b32.xlu0 %v444, 104
    %v481 = vpop.permute.xlu0 %480
    %483 = vrot.lane.b32.xlu0 %v444, 96
    %v484 = vpop.permute.xlu0 %483
    %486 = vrot.lane.b32.xlu0 %v444, 88
    %v487 = vpop.permute.xlu0 %486
    %489 = vrot.lane.b32.xlu0 %v444, 80
    %v490 = vpop.permute.xlu0 %489
    %492 = vrot.lane.b32.xlu0 %v444, 72
    %v493 = vpop.permute.xlu0 %492
    %495 = vrot.lane.b32.xlu0 %v444, 64
    %v496 = vpop.permute.xlu0 %495
    %498 = vrot.lane.b32.xlu0 %v444, 56
    %v499 = vpop.permute.xlu0 %498
    %501 = vrot.lane.b32.xlu0 %v444, 48
    %v502 = vpop.permute.xlu0 %501
    %504 = vrot.lane.b32.xlu0 %v444, 40
    %v505 = vpop.permute.xlu0 %504
    %507 = vrot.lane.b32.xlu0 %v444, 32
    %v508 = vpop.permute.xlu0 %507
    %510 = vrot.lane.b32.xlu0 %v444, 24
    %v511 = vpop.permute.xlu0 %510
    %513 = vrot.lane.b32.xlu0 %v444, 16
    %v514 = vpop.permute.xlu0 %513
    %516 = vrot.lane.b32.xlu0 %v444, 8
    %v517 = vpop.permute.xlu0 %516
    %520 = vrot.lane.b32.xlu0 %v470, 120
    %v521 = vpop.permute.xlu0 %520
    %523 = vrot.lane.b32.xlu0 %v470, 112
    %v524 = vpop.permute.xlu0 %523
    %526 = vrot.lane.b32.xlu0 %v470, 104
    %v527 = vpop.permute.xlu0 %526
    %529 = vrot.lane.b32.xlu0 %v470, 96
    %v530 = vpop.permute.xlu0 %529
    %532 = vrot.lane.b32.xlu0 %v470, 88
    %v533 = vpop.permute.xlu0 %532
    %535 = vrot.lane.b32.xlu0 %v470, 80
    %v536 = vpop.permute.xlu0 %535
    %538 = vrot.lane.b32.xlu0 %v470, 72
    %v539 = vpop.permute.xlu0 %538
    %v541 = vrot.slane %v478, 4
    %vm542 = vcmask 1047556
    %v543 = vsel %vm542, %v541, %v444
    %v544 = vrot.slane %v444, 4
    %v545 = vsel %vm542, %v478, %v544
    %v547 = vunpack.c.l.s4 1983009808
    %v548 = vunpack.c.0.s8 %v547
    %v549 = vperm.slane %v543, %v548
    %v551 = vunpack.c.l.s4 1983009808
    %v552 = vunpack.c.0.s8 %v551
    %v553 = vperm.slane %v545, %v552
    %v554 = vrot.slane %v481, 4
    %v555 = vsel %vm542, %v554, %v475
    %v556 = vrot.slane %v475, 4
    %v557 = vsel %vm542, %v481, %v556
    %v559 = vunpack.c.l.s4 1983009808
    %v560 = vunpack.c.0.s8 %v559
    %v561 = vperm.slane %v555, %v560
    %v563 = vunpack.c.l.s4 1983009808
    %v564 = vunpack.c.0.s8 %v563
    %v565 = vperm.slane %v557, %v564
    %v566 = vrot.slane %v490, 4
    %v567 = vsel %vm542, %v566, %v484
    %v568 = vrot.slane %v484, 4
    %v569 = vsel %vm542, %v490, %v568
    %v571 = vunpack.c.l.s4 1983009808
    %v572 = vunpack.c.0.s8 %v571
    %v573 = vperm.slane %v567, %v572
    %v575 = vunpack.c.l.s4 1983009808
    %v576 = vunpack.c.0.s8 %v575
    %v577 = vperm.slane %v569, %v576
    %v578 = vrot.slane %v493, 4
    %v579 = vsel %vm542, %v578, %v487
    %v580 = vrot.slane %v487, 4
    %v581 = vsel %vm542, %v493, %v580
    %v583 = vunpack.c.l.s4 1983009808
    %v584 = vunpack.c.0.s8 %v583
    %v585 = vperm.slane %v579, %v584
    %v587 = vunpack.c.l.s4 1983009808
    %v588 = vunpack.c.0.s8 %v587
    %v589 = vperm.slane %v581, %v588
    %v590 = vrot.slane %v561, 4
    %v591 = vsel %vm542, %v590, %v549
    %v592 = vrot.slane %v549, 4
    %v593 = vsel %vm542, %v561, %v592
    %v595 = vunpack.c.l.s4 1934713408
    %v596 = vunpack.c.0.s8 %v595
    %v597 = vperm.slane %v591, %v596
    %v599 = vunpack.c.l.s4 1934713408
    %v600 = vunpack.c.0.s8 %v599
    %v601 = vperm.slane %v593, %v600
    %v602 = vrot.slane %v565, 4
    %v603 = vsel %vm542, %v602, %v553
    %v604 = vrot.slane %v553, 4
    %v605 = vsel %vm542, %v565, %v604
    %v607 = vunpack.c.l.s4 1934713408
    %v608 = vunpack.c.0.s8 %v607
    %v609 = vperm.slane %v603, %v608
    %v611 = vunpack.c.l.s4 1934713408
    %v612 = vunpack.c.0.s8 %v611
    %v613 = vperm.slane %v605, %v612
    %v614 = vrot.slane %v585, 4
    %v615 = vsel %vm542, %v614, %v573
    %v616 = vrot.slane %v573, 4
    %v617 = vsel %vm542, %v585, %v616
    %v619 = vunpack.c.l.s4 1934713408
    %v620 = vunpack.c.0.s8 %v619
    %v621 = vperm.slane %v615, %v620
    %v623 = vunpack.c.l.s4 1934713408
    %v624 = vunpack.c.0.s8 %v623
    %v625 = vperm.slane %v617, %v624
    %v626 = vrot.slane %v589, 4
    %v627 = vsel %vm542, %v626, %v577
    %v628 = vrot.slane %v577, 4
    %v629 = vsel %vm542, %v589, %v628
    %v631 = vunpack.c.l.s4 1934713408
    %v632 = vunpack.c.0.s8 %v631
    %v633 = vperm.slane %v627, %v632
    %v635 = vunpack.c.l.s4 1934713408
    %v636 = vunpack.c.0.s8 %v635
    %v637 = vperm.slane %v629, %v636
    %v638 = vrot.slane %v621, 4
    %v639 = vsel %vm542, %v638, %v597
    %v640 = vrot.slane %v597, 4
    %v641 = vsel %vm542, %v621, %v640
    %v642 = vrot.slane %v625, 4
    %v643 = vsel %vm542, %v642, %v601
    %v644 = vrot.slane %v601, 4
    %v645 = vsel %vm542, %v625, %v644
    %v646 = vrot.slane %v633, 4
    %v647 = vsel %vm542, %v646, %v609
    %v648 = vrot.slane %v609, 4
    %v649 = vsel %vm542, %v633, %v648
    %v650 = vrot.slane %v637, 4
    %v651 = vsel %vm542, %v650, %v613
    %v652 = vrot.slane %v613, 4
    %v653 = vsel %vm542, %v637, %v652
    %v654 = vrot.slane %v502, 4
    %v655 = vsel %vm542, %v654, %v496
    %v656 = vrot.slane %v496, 4
    %v657 = vsel %vm542, %v502, %v656
    %v659 = vunpack.c.l.s4 1983009808
    %v660 = vunpack.c.0.s8 %v659
    %v661 = vperm.slane %v655, %v660
    %v663 = vunpack.c.l.s4 1983009808
    %v664 = vunpack.c.0.s8 %v663
    %v665 = vperm.slane %v657, %v664
    %v666 = vrot.slane %v505, 4
    %v667 = vsel %vm542, %v666, %v499
    %v668 = vrot.slane %v499, 4
    %v669 = vsel %vm542, %v505, %v668
    %v671 = vunpack.c.l.s4 1983009808
    %v672 = vunpack.c.0.s8 %v671
    %v673 = vperm.slane %v667, %v672
    %v675 = vunpack.c.l.s4 1983009808
    %v676 = vunpack.c.0.s8 %v675
    %v677 = vperm.slane %v669, %v676
    %v678 = vrot.slane %v514, 4
    %v679 = vsel %vm542, %v678, %v508
    %v680 = vrot.slane %v508, 4
    %v681 = vsel %vm542, %v514, %v680
    %v683 = vunpack.c.l.s4 1983009808
    %v684 = vunpack.c.0.s8 %v683
    %v685 = vperm.slane %v679, %v684
    %v687 = vunpack.c.l.s4 1983009808
    %v688 = vunpack.c.0.s8 %v687
    %v689 = vperm.slane %v681, %v688
    %v690 = vrot.slane %v517, 4
    %v691 = vsel %vm542, %v690, %v511
    %v692 = vrot.slane %v511, 4
    %v693 = vsel %vm542, %v517, %v692
    %v695 = vunpack.c.l.s4 1983009808
    %v696 = vunpack.c.0.s8 %v695
    %v697 = vperm.slane %v691, %v696
    %v699 = vunpack.c.l.s4 1983009808
    %v700 = vunpack.c.0.s8 %v699
    %v701 = vperm.slane %v693, %v700
    %v702 = vrot.slane %v673, 4
    %v703 = vsel %vm542, %v702, %v661
    %v704 = vrot.slane %v661, 4
    %v705 = vsel %vm542, %v673, %v704
    %v707 = vunpack.c.l.s4 1934713408
    %v708 = vunpack.c.0.s8 %v707
    %v709 = vperm.slane %v703, %v708
    %v711 = vunpack.c.l.s4 1934713408
    %v712 = vunpack.c.0.s8 %v711
    %v713 = vperm.slane %v705, %v712
    %v714 = vrot.slane %v677, 4
    %v715 = vsel %vm542, %v714, %v665
    %v716 = vrot.slane %v665, 4
    %v717 = vsel %vm542, %v677, %v716
    %v719 = vunpack.c.l.s4 1934713408
    %v720 = vunpack.c.0.s8 %v719
    %v721 = vperm.slane %v715, %v720
    %v723 = vunpack.c.l.s4 1934713408
    %v724 = vunpack.c.0.s8 %v723
    %v725 = vperm.slane %v717, %v724
    %v726 = vrot.slane %v697, 4
    %v727 = vsel %vm542, %v726, %v685
    %v728 = vrot.slane %v685, 4
    %v729 = vsel %vm542, %v697, %v728
    %v731 = vunpack.c.l.s4 1934713408
    %v732 = vunpack.c.0.s8 %v731
    %v733 = vperm.slane %v727, %v732
    %v735 = vunpack.c.l.s4 1934713408
    %v736 = vunpack.c.0.s8 %v735
    %v737 = vperm.slane %v729, %v736
    %v738 = vrot.slane %v701, 4
    %v739 = vsel %vm542, %v738, %v689
    %v740 = vrot.slane %v689, 4
    %v741 = vsel %vm542, %v701, %v740
    %v743 = vunpack.c.l.s4 1934713408
    %v744 = vunpack.c.0.s8 %v743
    %v745 = vperm.slane %v739, %v744
    %v747 = vunpack.c.l.s4 1934713408
    %v748 = vunpack.c.0.s8 %v747
    %v749 = vperm.slane %v741, %v748
    %v750 = vrot.slane %v733, 4
    %v751 = vsel %vm542, %v750, %v709
    %v752 = vrot.slane %v709, 4
    %v753 = vsel %vm542, %v733, %v752
    %v754 = vrot.slane %v737, 4
    %v755 = vsel %vm542, %v754, %v713
    %v756 = vrot.slane %v713, 4
    %v757 = vsel %vm542, %v737, %v756
    %v758 = vrot.slane %v745, 4
    %v759 = vsel %vm542, %v758, %v721
    %v760 = vrot.slane %v721, 4
    %v761 = vsel %vm542, %v745, %v760
    %v762 = vrot.slane %v749, 4
    %v763 = vsel %vm542, %v762, %v725
    %v764 = vrot.slane %v725, 4
    %v765 = vsel %vm542, %v749, %v764
    %v766 = vrot.slane %v524, 4
    %v767 = vsel %vm542, %v766, %v470
    %v768 = vrot.slane %v470, 4
    %v769 = vsel %vm542, %v524, %v768
    %v771 = vunpack.c.l.s4 1983009808
    %v772 = vunpack.c.0.s8 %v771
    %v773 = vperm.slane %v767, %v772
    %v775 = vunpack.c.l.s4 1983009808
    %v776 = vunpack.c.0.s8 %v775
    %v777 = vperm.slane %v769, %v776
    %v778 = vrot.slane %v527, 4
    %v779 = vsel %vm542, %v778, %v521
    %v780 = vrot.slane %v521, 4
    %v781 = vsel %vm542, %v527, %v780
    %v783 = vunpack.c.l.s4 1983009808
    %v784 = vunpack.c.0.s8 %v783
    %v785 = vperm.slane %v779, %v784
    %v787 = vunpack.c.l.s4 1983009808
    %v788 = vunpack.c.0.s8 %v787
    %v789 = vperm.slane %v781, %v788
    %v790 = vrot.slane %v536, 4
    %v791 = vsel %vm542, %v790, %v530
    %v792 = vrot.slane %v530, 4
    %v793 = vsel %vm542, %v536, %v792
    %v795 = vunpack.c.l.s4 1983009808
    %v796 = vunpack.c.0.s8 %v795
    %v797 = vperm.slane %v791, %v796
    %v799 = vunpack.c.l.s4 1983009808
    %v800 = vunpack.c.0.s8 %v799
    %v801 = vperm.slane %v793, %v800
    %v802 = vrot.slane %v539, 4
    %v803 = vsel %vm542, %v802, %v533
    %v804 = vrot.slane %v533, 4
    %v805 = vsel %vm542, %v539, %v804
    %v807 = vunpack.c.l.s4 1983009808
    %v808 = vunpack.c.0.s8 %v807
    %v809 = vperm.slane %v803, %v808
    %v811 = vunpack.c.l.s4 1983009808
    %v812 = vunpack.c.0.s8 %v811
    %v813 = vperm.slane %v805, %v812
    %v814 = vrot.slane %v785, 4
    %v815 = vsel %vm542, %v814, %v773
    %v816 = vrot.slane %v773, 4
    %v817 = vsel %vm542, %v785, %v816
    %v819 = vunpack.c.l.s4 1934713408
    %v820 = vunpack.c.0.s8 %v819
    %v821 = vperm.slane %v815, %v820
    %v823 = vunpack.c.l.s4 1934713408
    %v824 = vunpack.c.0.s8 %v823
    %v825 = vperm.slane %v817, %v824
    %v826 = vrot.slane %v789, 4
    %v827 = vsel %vm542, %v826, %v777
    %v828 = vrot.slane %v777, 4
    %v829 = vsel %vm542, %v789, %v828
    %v831 = vunpack.c.l.s4 1934713408
    %v832 = vunpack.c.0.s8 %v831
    %v833 = vperm.slane %v827, %v832
    %v835 = vunpack.c.l.s4 1934713408
    %v836 = vunpack.c.0.s8 %v835
    %v837 = vperm.slane %v829, %v836
    %v838 = vrot.slane %v809, 4
    %v839 = vsel %vm542, %v838, %v797
    %v840 = vrot.slane %v797, 4
    %v841 = vsel %vm542, %v809, %v840
    %v843 = vunpack.c.l.s4 1934713408
    %v844 = vunpack.c.0.s8 %v843
    %v845 = vperm.slane %v839, %v844
    %v847 = vunpack.c.l.s4 1934713408
    %v848 = vunpack.c.0.s8 %v847
    %v849 = vperm.slane %v841, %v848
    %v850 = vrot.slane %v813, 4
    %v851 = vsel %vm542, %v850, %v801
    %v852 = vrot.slane %v801, 4
    %v853 = vsel %vm542, %v813, %v852
    %v855 = vunpack.c.l.s4 1934713408
    %v856 = vunpack.c.0.s8 %v855
    %v857 = vperm.slane %v851, %v856
    %v859 = vunpack.c.l.s4 1934713408
    %v860 = vunpack.c.0.s8 %v859
    %v861 = vperm.slane %v853, %v860
    %v862 = vrot.slane %v845, 4
    %v863 = vsel %vm542, %v862, %v821
    %v864 = vrot.slane %v821, 4
    %v865 = vsel %vm542, %v845, %v864
    %v866 = vrot.slane %v849, 4
    %v867 = vsel %vm542, %v866, %v825
    %v868 = vrot.slane %v825, 4
    %v869 = vsel %vm542, %v849, %v868
    %v870 = vrot.slane %v857, 4
    %v871 = vsel %vm542, %v870, %v833
    %v872 = vrot.slane %v833, 4
    %v873 = vsel %vm542, %v857, %v872
    %v874 = vrot.slane %v861, 4
    %v875 = vsel %vm542, %v874, %v837
    %v876 = vrot.slane %v837, 4
    %v877 = vsel %vm542, %v861, %v876
    %v878 = vpack.c.bf16 %v639, %v639
    %v879 = vpack.c.bf16 %v751, %v751
    %v880 = vpack.c.bf16 %v863, %v863
    %v881 = vpack.c.bf16 %v641, %v641
    %v882 = vpack.c.bf16 %v753, %v753
    %v883 = vpack.c.bf16 %v865, %v865
    %v884 = vpack.c.bf16 %v643, %v643
    %v885 = vpack.c.bf16 %v755, %v755
    %v886 = vpack.c.bf16 %v867, %v867
    %v887 = vpack.c.bf16 %v645, %v645
    %v888 = vpack.c.bf16 %v757, %v757
    %v889 = vpack.c.bf16 %v869, %v869
    %v890 = vpack.c.bf16 %v647, %v647
    %v891 = vpack.c.bf16 %v759, %v759
    %v892 = vpack.c.bf16 %v871, %v871
    %v893 = vpack.c.bf16 %v649, %v649
    %v894 = vpack.c.bf16 %v761, %v761
    %v895 = vpack.c.bf16 %v873, %v873
    %v896 = vpack.c.bf16 %v651, %v651
    %v897 = vpack.c.bf16 %v763, %v763
    %v898 = vpack.c.bf16 %v875, %v875
    %v899 = vpack.c.bf16 %v653, %v653
    %v900 = vpack.c.bf16 %v765, %v765
    %v901 = vpack.c.bf16 %v877, %v877
    %v902 = vrot.slane %v890, 4
    %vm903 = vcmask 1047556
    %v904 = vsel %vm903, %v902, %v878
    %v906 = vunpack.c.l.s4 1983009808
    %v907 = vunpack.c.0.s8 %v906
    %v908 = vperm.slane %v904, %v907
    %v909 = vrot.slane %v896, 4
    %v910 = vsel %vm903, %v909, %v884
    %v912 = vunpack.c.l.s4 1983009808
    %v913 = vunpack.c.0.s8 %v912
    %v914 = vperm.slane %v910, %v913
    %v915 = vrot.slane %v914, 4
    %v916 = vsel %vm903, %v915, %v908
    %v917 = vrot.slane %v908, 4
    %v918 = vsel %vm903, %v914, %v917
    %v920 = vunpack.c.l.s4 1934713408
    %v921 = vunpack.c.0.s8 %v920
    %v922 = vperm.slane %v916, %v921
    %v924 = vunpack.c.l.s4 1934713408
    %v925 = vunpack.c.0.s8 %v924
    %v926 = vperm.slane %v918, %v925
    %v927 = vrot.slane %v922, 4
    %v928 = vsel %vm903, 0, %v927
    %v929 = vrot.slane %v926, 4
    %v930 = vsel %vm903, 0, %v929
    %v931 = vrot.slane %v893, 4
    %v932 = vsel %vm903, %v931, %v881
    %v934 = vunpack.c.l.s4 1983009808
    %v935 = vunpack.c.0.s8 %v934
    %v936 = vperm.slane %v932, %v935
    %v937 = vrot.slane %v899, 4
    %v938 = vsel %vm903, %v937, %v887
    %v940 = vunpack.c.l.s4 1983009808
    %v941 = vunpack.c.0.s8 %v940
    %v942 = vperm.slane %v938, %v941
    %v943 = vrot.slane %v942, 4
    %v944 = vsel %vm903, %v943, %v936
    %v945 = vrot.slane %v936, 4
    %v946 = vsel %vm903, %v942, %v945
    %v948 = vunpack.c.l.s4 1934713408
    %v949 = vunpack.c.0.s8 %v948
    %v950 = vperm.slane %v944, %v949
    %v952 = vunpack.c.l.s4 1934713408
    %v953 = vunpack.c.0.s8 %v952
    %v954 = vperm.slane %v946, %v953
    %v955 = vrot.slane %v950, 4
    %v956 = vsel %vm903, 0, %v955
    %v957 = vrot.slane %v954, 4
    %v958 = vsel %vm903, 0, %v957
    %v961 = vpack.i.b16 %v950, %v922
    %v962 = vshrl.u32 %v922, 16
    %v963 = vshrl.u32 %v950, 16
    %v964 = vpack.i.b16 %v963, %v962
    %v967 = vpack.i.b16 %v956, %v928
    %v968 = vshrl.u32 %v928, 16
    %v969 = vshrl.u32 %v956, 16
    %v970 = vpack.i.b16 %v969, %v968
    %v973 = vpack.i.b16 %v954, %v926
    %v974 = vshrl.u32 %v926, 16
    %v975 = vshrl.u32 %v954, 16
    %v976 = vpack.i.b16 %v975, %v974
    %v979 = vpack.i.b16 %v958, %v930
    %v980 = vshrl.u32 %v930, 16
    %v981 = vshrl.u32 %v958, 16
    %v982 = vpack.i.b16 %v981, %v980
    %983 = vxpose.xlu0.c.b16.start [1/8] %v879, 128
    %984 = vxpose.xlu0.c.b16.cont [2/8] 0, 128
    %985 = vxpose.xlu0.c.b16.cont [3/8] 0, 128
    %986 = vxpose.xlu0.c.b16.cont [4/8] 0, 128
    %987 = vxpose.xlu0.c.b16.cont [5/8] 0, 128
    %988 = vxpose.xlu0.c.b16.cont [6/8] 0, 128
    %989 = vxpose.xlu0.c.b16.cont [7/8] 0, 128
    %990 = vxpose.xlu0.c.b16.end [8/8] 0, 128
    %v991 = vpop.trf.xlu0
    %v992 = vpop.trf.xlu0
    %v993 = vpop.trf.xlu0
    %v994 = vpop.trf.xlu0
    %v995 = vpop.trf.xlu0
    %v996 = vpop.trf.xlu0
    %v997 = vpop.trf.xlu0
    %v998 = vpop.trf.xlu0
    %999 = vxpose.xlu0.c.b16.start [1/8] %v882, 128
    %1000 = vxpose.xlu0.c.b16.cont [2/8] 0, 128
    %1001 = vxpose.xlu0.c.b16.cont [3/8] 0, 128
    %1002 = vxpose.xlu0.c.b16.cont [4/8] 0, 128
    %1003 = vxpose.xlu0.c.b16.cont [5/8] 0, 128
    %1004 = vxpose.xlu0.c.b16.cont [6/8] 0, 128
    %1005 = vxpose.xlu0.c.b16.cont [7/8] 0, 128
    %1006 = vxpose.xlu0.c.b16.end [8/8] 0, 128
    %v1007 = vpop.trf.xlu0
    %v1008 = vpop.trf.xlu0
    %v1009 = vpop.trf.xlu0
    %v1010 = vpop.trf.xlu0
    %v1011 = vpop.trf.xlu0
    %v1012 = vpop.trf.xlu0
    %v1013 = vpop.trf.xlu0
    %v1014 = vpop.trf.xlu0
    %1015 = vxpose.xlu0.c.b16.start [1/8] %v885, 128
    %1016 = vxpose.xlu0.c.b16.cont [2/8] 0, 128
    %1017 = vxpose.xlu0.c.b16.cont [3/8] 0, 128
    %1018 = vxpose.xlu0.c.b16.cont [4/8] 0, 128
    %1019 = vxpose.xlu0.c.b16.cont [5/8] 0, 128
    %1020 = vxpose.xlu0.c.b16.cont [6/8] 0, 128
    %1021 = vxpose.xlu0.c.b16.cont [7/8] 0, 128
    %1022 = vxpose.xlu0.c.b16.end [8/8] 0, 128
    %v1023 = vpop.trf.xlu0
    %v1024 = vpop.trf.xlu0
    %v1025 = vpop.trf.xlu0
    %v1026 = vpop.trf.xlu0
    %v1027 = vpop.trf.xlu0
    %v1028 = vpop.trf.xlu0
    %v1029 = vpop.trf.xlu0
    %v1030 = vpop.trf.xlu0
    %1031 = vxpose.xlu0.c.b16.start [1/8] %v888, 128
    %1032 = vxpose.xlu0.c.b16.cont [2/8] 0, 128
    %1033 = vxpose.xlu0.c.b16.cont [3/8] 0, 128
    %1034 = vxpose.xlu0.c.b16.cont [4/8] 0, 128
    %1035 = vxpose.xlu0.c.b16.cont [5/8] 0, 128
    %1036 = vxpose.xlu0.c.b16.cont [6/8] 0, 128
    %1037 = vxpose.xlu0.c.b16.cont [7/8] 0, 128
    %1038 = vxpose.xlu0.c.b16.end [8/8] 0, 128
    %v1039 = vpop.trf.xlu0
    %v1040 = vpop.trf.xlu0
    %v1041 = vpop.trf.xlu0
    %v1042 = vpop.trf.xlu0
    %v1043 = vpop.trf.xlu0
    %v1044 = vpop.trf.xlu0
    %v1045 = vpop.trf.xlu0
    %v1046 = vpop.trf.xlu0
    %1047 = vxpose.xlu0.c.b16.start [1/8] %v891, 128
    %1048 = vxpose.xlu0.c.b16.cont [2/8] 0, 128
    %1049 = vxpose.xlu0.c.b16.cont [3/8] 0, 128
    %1050 = vxpose.xlu0.c.b16.cont [4/8] 0, 128
    %1051 = vxpose.xlu0.c.b16.cont [5/8] 0, 128
    %1052 = vxpose.xlu0.c.b16.cont [6/8] 0, 128
    %1053 = vxpose.xlu0.c.b16.cont [7/8] 0, 128
    %1054 = vxpose.xlu0.c.b16.end [8/8] 0, 128
    %v1055 = vpop.trf.xlu0
    %v1056 = vpop.trf.xlu0
    %v1057 = vpop.trf.xlu0
    %v1058 = vpop.trf.xlu0
    %v1059 = vpop.trf.xlu0
    %v1060 = vpop.trf.xlu0
    %v1061 = vpop.trf.xlu0
    %v1062 = vpop.trf.xlu0
    %1063 = vxpose.xlu0.c.b16.start [1/8] %v894, 128
    %1064 = vxpose.xlu0.c.b16.cont [2/8] 0, 128
    %1065 = vxpose.xlu0.c.b16.cont [3/8] 0, 128
    %1066 = vxpose.xlu0.c.b16.cont [4/8] 0, 128
    %1067 = vxpose.xlu0.c.b16.cont [5/8] 0, 128
    %1068 = vxpose.xlu0.c.b16.cont [6/8] 0, 128
    %1069 = vxpose.xlu0.c.b16.cont [7/8] 0, 128
    %1070 = vxpose.xlu0.c.b16.end [8/8] 0, 128
    %v1071 = vpop.trf.xlu0
    %v1072 = vpop.trf.xlu0
    %v1073 = vpop.trf.xlu0
    %v1074 = vpop.trf.xlu0
    %v1075 = vpop.trf.xlu0
    %v1076 = vpop.trf.xlu0
    %v1077 = vpop.trf.xlu0
    %v1078 = vpop.trf.xlu0
    %1079 = vxpose.xlu0.c.b16.start [1/8] %v897, 128
    %1080 = vxpose.xlu0.c.b16.cont [2/8] 0, 128
    %1081 = vxpose.xlu0.c.b16.cont [3/8] 0, 128
    %1082 = vxpose.xlu0.c.b16.cont [4/8] 0, 128
    %1083 = vxpose.xlu0.c.b16.cont [5/8] 0, 128
    %1084 = vxpose.xlu0.c.b16.cont [6/8] 0, 128
    %1085 = vxpose.xlu0.c.b16.cont [7/8] 0, 128
    %1086 = vxpose.xlu0.c.b16.end [8/8] 0, 128
    %v1087 = vpop.trf.xlu0
    %v1088 = vpop.trf.xlu0
    %v1089 = vpop.trf.xlu0
    %v1090 = vpop.trf.xlu0
    %v1091 = vpop.trf.xlu0
    %v1092 = vpop.trf.xlu0
    %v1093 = vpop.trf.xlu0
    %v1094 = vpop.trf.xlu0
    %1095 = vxpose.xlu0.c.b16.start [1/8] %v900, 128
    %1096 = vxpose.xlu0.c.b16.cont [2/8] 0, 128
    %1097 = vxpose.xlu0.c.b16.cont [3/8] 0, 128
    %1098 = vxpose.xlu0.c.b16.cont [4/8] 0, 128
    %1099 = vxpose.xlu0.c.b16.cont [5/8] 0, 128
    %1100 = vxpose.xlu0.c.b16.cont [6/8] 0, 128
    %1101 = vxpose.xlu0.c.b16.cont [7/8] 0, 128
    %1102 = vxpose.xlu0.c.b16.end [8/8] 0, 128
    %v1103 = vpop.trf.xlu0
    %v1104 = vpop.trf.xlu0
    %v1105 = vpop.trf.xlu0
    %v1106 = vpop.trf.xlu0
    %v1107 = vpop.trf.xlu0
    %v1108 = vpop.trf.xlu0
    %v1109 = vpop.trf.xlu0
    %v1110 = vpop.trf.xlu0
    %v1111 = vrot.slane %v1055, 4
    %v1112 = vsel %vm903, %v1111, %v991
    %v1114 = vunpack.c.l.s4 1983009808
    %v1115 = vunpack.c.0.s8 %v1114
    %v1116 = vperm.slane %v1112, %v1115
    %v1117 = vrot.slane %v1087, 4
    %v1118 = vsel %vm903, %v1117, %v1023
    %v1120 = vunpack.c.l.s4 1983009808
    %v1121 = vunpack.c.0.s8 %v1120
    %v1122 = vperm.slane %v1118, %v1121
    %v1123 = vrot.slane %v1122, 4
    %v1124 = vsel %vm903, %v1123, %v1116
    %v1125 = vrot.slane %v1116, 4
    %v1126 = vsel %vm903, %v1122, %v1125
    %v1128 = vunpack.c.l.s4 1934713408
    %v1129 = vunpack.c.0.s8 %v1128
    %v1130 = vperm.slane %v1124, %v1129
    %v1132 = vunpack.c.l.s4 1934713408
    %v1133 = vunpack.c.0.s8 %v1132
    %v1134 = vperm.slane %v1126, %v1133
    %v1135 = vrot.slane %v1130, 4
    %v1136 = vsel %vm903, 0, %v1135
    %v1137 = vrot.slane %v1134, 4
    %v1138 = vsel %vm903, 0, %v1137
    %v1139 = vrot.slane %v1071, 4
    %v1140 = vsel %vm903, %v1139, %v1007
    %v1142 = vunpack.c.l.s4 1983009808
    %v1143 = vunpack.c.0.s8 %v1142
    %v1144 = vperm.slane %v1140, %v1143
    %v1145 = vrot.slane %v1103, 4
    %v1146 = vsel %vm903, %v1145, %v1039
    %v1148 = vunpack.c.l.s4 1983009808
    %v1149 = vunpack.c.0.s8 %v1148
    %v1150 = vperm.slane %v1146, %v1149
    %v1151 = vrot.slane %v1150, 4
    %v1152 = vsel %vm903, %v1151, %v1144
    %v1153 = vrot.slane %v1144, 4
    %v1154 = vsel %vm903, %v1150, %v1153
    %v1156 = vunpack.c.l.s4 1934713408
    %v1157 = vunpack.c.0.s8 %v1156
    %v1158 = vperm.slane %v1152, %v1157
    %v1160 = vunpack.c.l.s4 1934713408
    %v1161 = vunpack.c.0.s8 %v1160
    %v1162 = vperm.slane %v1154, %v1161
    %v1163 = vrot.slane %v1158, 4
    %v1164 = vsel %vm903, 0, %v1163
    %v1165 = vrot.slane %v1162, 4
    %v1166 = vsel %vm903, 0, %v1165
    %v1169 = vpack.i.b16 %v1158, %v1130
    %v1171 = vshrl.u32 %v1130, 16
    %v1172 = vshrl.u32 %v1158, 16
    %v1173 = vpack.i.b16 %v1172, %v1171
    %v1177 = vpack.i.b16 %v1164, %v1136
    %v1179 = vshrl.u32 %v1136, 16
    %v1180 = vshrl.u32 %v1164, 16
    %v1181 = vpack.i.b16 %v1180, %v1179
    %v1185 = vpack.i.b16 %v1162, %v1134
    %v1187 = vshrl.u32 %v1134, 16
    %v1188 = vshrl.u32 %v1162, 16
    %v1189 = vpack.i.b16 %v1188, %v1187
    %v1193 = vpack.i.b16 %v1166, %v1138
    %v1195 = vshrl.u32 %v1138, 16
    %v1196 = vshrl.u32 %v1166, 16
    %v1197 = vpack.i.b16 %v1196, %v1195
    %1199 = vxpose.xlu0.c.b16.start [1/8] %v1169, 128
    %1200 = vxpose.xlu0.c.b16.cont [2/8] 0, 128
    %1201 = vxpose.xlu0.c.b16.cont [3/8] 0, 128
    %1202 = vxpose.xlu0.c.b16.cont [4/8] 0, 128
    %1203 = vxpose.xlu0.c.b16.cont [5/8] 0, 128
    %1204 = vxpose.xlu0.c.b16.cont [6/8] 0, 128
    %1205 = vxpose.xlu0.c.b16.cont [7/8] 0, 128
    %1206 = vxpose.xlu0.c.b16.end [8/8] 0, 128
    %v1207 = vpop.trf.xlu0
    %v1208 = vpop.trf.xlu0
    %v1209 = vpop.trf.xlu0
    %v1210 = vpop.trf.xlu0
    %v1211 = vpop.trf.xlu0
    %v1212 = vpop.trf.xlu0
    %v1213 = vpop.trf.xlu0
    %v1214 = vpop.trf.xlu0
    %1215 = vxpose.xlu0.c.b16.start [1/8] %v1173, 128
    %1216 = vxpose.xlu0.c.b16.cont [2/8] 0, 128
    %1217 = vxpose.xlu0.c.b16.cont [3/8] 0, 128
    %1218 = vxpose.xlu0.c.b16.cont [4/8] 0, 128
    %1219 = vxpose.xlu0.c.b16.cont [5/8] 0, 128
    %1220 = vxpose.xlu0.c.b16.cont [6/8] 0, 128
    %1221 = vxpose.xlu0.c.b16.cont [7/8] 0, 128
    %1222 = vxpose.xlu0.c.b16.end [8/8] 0, 128
    %v1223 = vpop.trf.xlu0
    %v1224 = vpop.trf.xlu0
    %v1225 = vpop.trf.xlu0
    %v1226 = vpop.trf.xlu0
    %v1227 = vpop.trf.xlu0
    %v1228 = vpop.trf.xlu0
    %v1229 = vpop.trf.xlu0
    %v1230 = vpop.trf.xlu0
    %1231 = vxpose.xlu0.c.b16.start [1/8] %v1177, 128
    %1232 = vxpose.xlu0.c.b16.cont [2/8] 0, 128
    %1233 = vxpose.xlu0.c.b16.cont [3/8] 0, 128
    %1234 = vxpose.xlu0.c.b16.cont [4/8] 0, 128
    %1235 = vxpose.xlu0.c.b16.cont [5/8] 0, 128
    %1236 = vxpose.xlu0.c.b16.cont [6/8] 0, 128
    %1237 = vxpose.xlu0.c.b16.cont [7/8] 0, 128
    %1238 = vxpose.xlu0.c.b16.end [8/8] 0, 128
    %v1239 = vpop.trf.xlu0
    %v1240 = vpop.trf.xlu0
    %v1241 = vpop.trf.xlu0
    %v1242 = vpop.trf.xlu0
    %v1243 = vpop.trf.xlu0
    %v1244 = vpop.trf.xlu0
    %v1245 = vpop.trf.xlu0
    %v1246 = vpop.trf.xlu0
    %1247 = vxpose.xlu0.c.b16.start [1/8] %v1181, 128
    %1248 = vxpose.xlu0.c.b16.cont [2/8] 0, 128
    %1249 = vxpose.xlu0.c.b16.cont [3/8] 0, 128
    %1250 = vxpose.xlu0.c.b16.cont [4/8] 0, 128
    %1251 = vxpose.xlu0.c.b16.cont [5/8] 0, 128
    %1252 = vxpose.xlu0.c.b16.cont [6/8] 0, 128
    %1253 = vxpose.xlu0.c.b16.cont [7/8] 0, 128
    %1254 = vxpose.xlu0.c.b16.end [8/8] 0, 128
    %v1255 = vpop.trf.xlu0
    %v1256 = vpop.trf.xlu0
    %v1257 = vpop.trf.xlu0
    %v1258 = vpop.trf.xlu0
    %v1259 = vpop.trf.xlu0
    %v1260 = vpop.trf.xlu0
    %v1261 = vpop.trf.xlu0
    %v1262 = vpop.trf.xlu0
    %1263 = vxpose.xlu0.c.b16.start [1/8] %v1185, 128
    %1264 = vxpose.xlu0.c.b16.cont [2/8] 0, 128
    %1265 = vxpose.xlu0.c.b16.cont [3/8] 0, 128
    %1266 = vxpose.xlu0.c.b16.cont [4/8] 0, 128
    %1267 = vxpose.xlu0.c.b16.cont [5/8] 0, 128
    %1268 = vxpose.xlu0.c.b16.cont [6/8] 0, 128
    %1269 = vxpose.xlu0.c.b16.cont [7/8] 0, 128
    %1270 = vxpose.xlu0.c.b16.end [8/8] 0, 128
    %v1271 = vpop.trf.xlu0
    %v1272 = vpop.trf.xlu0
    %v1273 = vpop.trf.xlu0
    %v1274 = vpop.trf.xlu0
    %v1275 = vpop.trf.xlu0
    %v1276 = vpop.trf.xlu0
    %v1277 = vpop.trf.xlu0
    %v1278 = vpop.trf.xlu0
    %1279 = vxpose.xlu0.c.b16.start [1/8] %v1189, 128
    %1280 = vxpose.xlu0.c.b16.cont [2/8] 0, 128
    %1281 = vxpose.xlu0.c.b16.cont [3/8] 0, 128
    %1282 = vxpose.xlu0.c.b16.cont [4/8] 0, 128
    %1283 = vxpose.xlu0.c.b16.cont [5/8] 0, 128
    %1284 = vxpose.xlu0.c.b16.cont [6/8] 0, 128
    %1285 = vxpose.xlu0.c.b16.cont [7/8] 0, 128
    %1286 = vxpose.xlu0.c.b16.end [8/8] 0, 128
    %v1287 = vpop.trf.xlu0
    %v1288 = vpop.trf.xlu0
    %v1289 = vpop.trf.xlu0
    %v1290 = vpop.trf.xlu0
    %v1291 = vpop.trf.xlu0
    %v1292 = vpop.trf.xlu0
    %v1293 = vpop.trf.xlu0
    %v1294 = vpop.trf.xlu0
    %1295 = vxpose.xlu0.c.b16.start [1/8] %v1193, 128
    %1296 = vxpose.xlu0.c.b16.cont [2/8] 0, 128
    %1297 = vxpose.xlu0.c.b16.cont [3/8] 0, 128
    %1298 = vxpose.xlu0.c.b16.cont [4/8] 0, 128
    %1299 = vxpose.xlu0.c.b16.cont [5/8] 0, 128
    %1300 = vxpose.xlu0.c.b16.cont [6/8] 0, 128
    %1301 = vxpose.xlu0.c.b16.cont [7/8] 0, 128
    %1302 = vxpose.xlu0.c.b16.end [8/8] 0, 128
    %v1303 = vpop.trf.xlu0
    %v1304 = vpop.trf.xlu0
    %v1305 = vpop.trf.xlu0
    %v1306 = vpop.trf.xlu0
    %v1307 = vpop.trf.xlu0
    %v1308 = vpop.trf.xlu0
    %v1309 = vpop.trf.xlu0
    %v1310 = vpop.trf.xlu0
    %1311 = vxpose.xlu0.c.b16.start [1/8] %v1197, 128
    %1312 = vxpose.xlu0.c.b16.cont [2/8] 0, 128
    %1313 = vxpose.xlu0.c.b16.cont [3/8] 0, 128
    %1314 = vxpose.xlu0.c.b16.cont [4/8] 0, 128
    %1315 = vxpose.xlu0.c.b16.cont [5/8] 0, 128
    %1316 = vxpose.xlu0.c.b16.cont [6/8] 0, 128
    %1317 = vxpose.xlu0.c.b16.cont [7/8] 0, 128
    %1318 = vxpose.xlu0.c.b16.end [8/8] 0, 128
    %v1319 = vpop.trf.xlu0
    %v1320 = vpop.trf.xlu0
    %v1321 = vpop.trf.xlu0
    %v1322 = vpop.trf.xlu0
    %v1323 = vpop.trf.xlu0
    %v1324 = vpop.trf.xlu0
    %v1325 = vpop.trf.xlu0
    %v1326 = vpop.trf.xlu0
    %v1327 = vrot.slane %v1271, 4
    %v1328 = vsel %vm903, %v1327, %v1207
    %v1330 = vunpack.c.l.s4 1983009808
    %v1331 = vunpack.c.0.s8 %v1330
    %v1332 = vperm.slane %v1328, %v1331
    %v1333 = vrot.slane %v1303, 4
    %v1334 = vsel %vm903, %v1333, %v1239
    %v1336 = vunpack.c.l.s4 1983009808
    %v1337 = vunpack.c.0.s8 %v1336
    %v1338 = vperm.slane %v1334, %v1337
    %v1339 = vrot.slane %v1338, 4
    %v1340 = vsel %vm903, %v1339, %v1332
    %v1341 = vrot.slane %v1332, 4
    %v1342 = vsel %vm903, %v1338, %v1341
    %v1344 = vunpack.c.l.s4 1934713408
    %v1345 = vunpack.c.0.s8 %v1344
    %v1346 = vperm.slane %v1340, %v1345
    %v1348 = vunpack.c.l.s4 1934713408
    %v1349 = vunpack.c.0.s8 %v1348
    %v1350 = vperm.slane %v1342, %v1349
    %v1351 = vrot.slane %v1346, 4
    %v1352 = vsel %vm903, 0, %v1351
    %v1353 = vrot.slane %v1350, 4
    %v1354 = vsel %vm903, 0, %v1353
    %v1355 = vrot.slane %v1287, 4
    %v1356 = vsel %vm903, %v1355, %v1223
    %v1358 = vunpack.c.l.s4 1983009808
    %v1359 = vunpack.c.0.s8 %v1358
    %v1360 = vperm.slane %v1356, %v1359
    %v1361 = vrot.slane %v1319, 4
    %v1362 = vsel %vm903, %v1361, %v1255
    %v1364 = vunpack.c.l.s4 1983009808
    %v1365 = vunpack.c.0.s8 %v1364
    %v1366 = vperm.slane %v1362, %v1365
    %v1367 = vrot.slane %v1366, 4
    %v1368 = vsel %vm903, %v1367, %v1360
    %v1369 = vrot.slane %v1360, 4
    %v1370 = vsel %vm903, %v1366, %v1369
    %v1372 = vunpack.c.l.s4 1934713408
    %v1373 = vunpack.c.0.s8 %v1372
    %v1374 = vperm.slane %v1368, %v1373
    %v1376 = vunpack.c.l.s4 1934713408
    %v1377 = vunpack.c.0.s8 %v1376
    %v1378 = vperm.slane %v1370, %v1377
    %v1379 = vrot.slane %v1374, 4
    %v1380 = vsel %vm903, 0, %v1379
    %v1381 = vrot.slane %v1378, 4
    %v1382 = vsel %vm903, 0, %v1381
    %v1385 = vpack.i.b16 %v1374, %v1346
    %v1386 = vshrl.u32 %v1346, 16
    %v1387 = vshrl.u32 %v1374, 16
    %v1388 = vpack.i.b16 %v1387, %v1386
    %v1391 = vpack.i.b16 %v1380, %v1352
    %v1392 = vshrl.u32 %v1352, 16
    %v1393 = vshrl.u32 %v1380, 16
    %v1394 = vpack.i.b16 %v1393, %v1392
    %v1397 = vpack.i.b16 %v1378, %v1350
    %v1398 = vshrl.u32 %v1350, 16
    %v1399 = vshrl.u32 %v1378, 16
    %v1400 = vpack.i.b16 %v1399, %v1398
    %v1403 = vpack.i.b16 %v1382, %v1354
    %v1404 = vshrl.u32 %v1354, 16
    %v1405 = vshrl.u32 %v1382, 16
    %v1406 = vpack.i.b16 %v1405, %v1404
    %vm1407 = vcmask 64512
    %v1409 = vsel %vm1407, %v961, 0
    %vm1411 = vcmask 1043456
    %v1413 = vsel %vm1411, %v1385, 0
    %1415 = vmatpush.bf16.msra.mxu0 0
    %1416 = vmatpush.bf16.msra.mxu0 0
    %1417 = vmatpush.bf16.msra.mxu0 0
    %1418 = vmatpush.bf16.msra.mxu0 0
    %1419 = vmatpush.bf16.msra.mxu0 0
    %1420 = vmatpush.bf16.msra.mxu0 0
    %1421 = vmatpush.bf16.msra.mxu0 0
    %1422 = vmatpush.bf16.msra.mxu0 %v1413
    %1423 = vmatmul.bf16.gmra.mxu0 %v1409
    %v1424 = vpop.f32.mrf.mxu0
    %v1425 = vadd.f32 0.0, %v1424
    %v1426 = vpop.f32.mrf.mxu0
    %1427 = vdwg.mxu0
    %v1429 = vsel %vm1407, %v964, 0
    %v1432 = vsel %vm1411, %v1388, 0
    %1434 = vmatpush.bf16.msra.mxu0 0
    %1435 = vmatpush.bf16.msra.mxu0 0
    %1436 = vmatpush.bf16.msra.mxu0 0
    %1437 = vmatpush.bf16.msra.mxu0 0
    %1438 = vmatpush.bf16.msra.mxu0 0
    %1439 = vmatpush.bf16.msra.mxu0 0
    %1440 = vmatpush.bf16.msra.mxu0 0
    %1441 = vmatpush.bf16.msra.mxu0 %v1432
    %1442 = vmatmul.bf16.gmra.mxu0 %v1429
    %v1443 = vpop.f32.mrf.mxu0
    %v1444 = vadd.f32 0.0, %v1443
    %v1445 = vpop.f32.mrf.mxu0
    %1446 = vdwg.mxu0
    %v1448 = vsel %vm1407, %v967, 0
    %v1451 = vsel %vm1411, %v1391, 0
    %1453 = vmatpush.bf16.msra.mxu0 0
    %1454 = vmatpush.bf16.msra.mxu0 0
    %1455 = vmatpush.bf16.msra.mxu0 0
    %1456 = vmatpush.bf16.msra.mxu0 0
    %1457 = vmatpush.bf16.msra.mxu0 0
    %1458 = vmatpush.bf16.msra.mxu0 0
    %1459 = vmatpush.bf16.msra.mxu0 0
    %1460 = vmatpush.bf16.msra.mxu0 %v1451
    %1461 = vmatmul.bf16.gmra.mxu0 %v1448
    %v1462 = vpop.f32.mrf.mxu0
    %v1463 = vadd.f32 0.0, %v1462
    %v1464 = vpop.f32.mrf.mxu0
    %1465 = vdwg.mxu0
    %v1467 = vsel %vm1407, %v970, 0
    %v1470 = vsel %vm1411, %v1394, 0
    %1472 = vmatpush.bf16.msra.mxu0 0
    %1473 = vmatpush.bf16.msra.mxu0 0
    %1474 = vmatpush.bf16.msra.mxu0 0
    %1475 = vmatpush.bf16.msra.mxu0 0
    %1476 = vmatpush.bf16.msra.mxu0 0
    %1477 = vmatpush.bf16.msra.mxu0 0
    %1478 = vmatpush.bf16.msra.mxu0 0
    %1479 = vmatpush.bf16.msra.mxu0 %v1470
    %1480 = vmatmul.bf16.gmra.mxu0 %v1467
    %v1481 = vpop.f32.mrf.mxu0
    %v1482 = vadd.f32 0.0, %v1481
    %v1483 = vpop.f32.mrf.mxu0
    %1484 = vdwg.mxu0
    %v1486 = vsel %vm1407, %v973, 0
    %v1489 = vsel %vm1411, %v1397, 0
    %1491 = vmatpush.bf16.msra.mxu0 0
    %1492 = vmatpush.bf16.msra.mxu0 0
    %1493 = vmatpush.bf16.msra.mxu0 0
    %1494 = vmatpush.bf16.msra.mxu0 0
    %1495 = vmatpush.bf16.msra.mxu0 0
    %1496 = vmatpush.bf16.msra.mxu0 0
    %1497 = vmatpush.bf16.msra.mxu0 0
    %1498 = vmatpush.bf16.msra.mxu0 %v1489
    %1499 = vmatmul.bf16.gmra.mxu0 %v1486
    %v1500 = vpop.f32.mrf.mxu0
    %v1501 = vadd.f32 0.0, %v1500
    %v1502 = vpop.f32.mrf.mxu0
    %1503 = vdwg.mxu0
    %v1505 = vsel %vm1407, %v976, 0
    %v1508 = vsel %vm1411, %v1400, 0
    %1510 = vmatpush.bf16.msra.mxu0 0
    %1511 = vmatpush.bf16.msra.mxu0 0
    %1512 = vmatpush.bf16.msra.mxu0 0
    %1513 = vmatpush.bf16.msra.mxu0 0
    %1514 = vmatpush.bf16.msra.mxu0 0
    %1515 = vmatpush.bf16.msra.mxu0 0
    %1516 = vmatpush.bf16.msra.mxu0 0
    %1517 = vmatpush.bf16.msra.mxu0 %v1508
    %1518 = vmatmul.bf16.gmra.mxu0 %v1505
    %v1519 = vpop.f32.mrf.mxu0
    %v1520 = vadd.f32 0.0, %v1519
    %v1521 = vpop.f32.mrf.mxu0
    %1522 = vdwg.mxu0
    %v1524 = vsel %vm1407, %v979, 0
    %v1527 = vsel %vm1411, %v1403, 0
    %1529 = vmatpush.bf16.msra.mxu0 0
    %1530 = vmatpush.bf16.msra.mxu0 0
    %1531 = vmatpush.bf16.msra.mxu0 0
    %1532 = vmatpush.bf16.msra.mxu0 0
    %1533 = vmatpush.bf16.msra.mxu0 0
    %1534 = vmatpush.bf16.msra.mxu0 0
    %1535 = vmatpush.bf16.msra.mxu0 0
    %1536 = vmatpush.bf16.msra.mxu0 %v1527
    %1537 = vmatmul.bf16.gmra.mxu0 %v1524
    %v1538 = vpop.f32.mrf.mxu0
    %v1539 = vadd.f32 0.0, %v1538
    %v1540 = vpop.f32.mrf.mxu0
    %1541 = vdwg.mxu0
    %v1543 = vsel %vm1407, %v982, 0
    %v1546 = vsel %vm1411, %v1406, 0
    %1548 = vmatpush.bf16.msra.mxu0 0
    %1549 = vmatpush.bf16.msra.mxu0 0
    %1550 = vmatpush.bf16.msra.mxu0 0
    %1551 = vmatpush.bf16.msra.mxu0 0
    %1552 = vmatpush.bf16.msra.mxu0 0
    %1553 = vmatpush.bf16.msra.mxu0 0
    %1554 = vmatpush.bf16.msra.mxu0 0
    %1555 = vmatpush.bf16.msra.mxu0 %v1546
    %1556 = vmatmul.bf16.gmra.mxu0 %v1543
    %v1557 = vpop.f32.mrf.mxu0
    %v1558 = vadd.f32 0.0, %v1557
    %v1559 = vpop.f32.mrf.mxu0
    %1560 = vdwg.mxu0
    %v1561 = vsel %vm1407, %v1425, -inf
    %1562 = vmax.xlane.f32.xlu0 %v1561
    %v1563 = vpop.xlane.xlu0 %1562
    %v1564 = vsel %vm1407, %v1444, -inf
    %1565 = vmax.xlane.f32.xlu0 %v1564
    %v1566 = vpop.xlane.xlu0 %1565
    %v1567 = vsel %vm1407, %v1463, -inf
    %1568 = vmax.xlane.f32.xlu0 %v1567
    %v1569 = vpop.xlane.xlu0 %1568
    %v1570 = vsel %vm1407, %v1482, -inf
    %1571 = vmax.xlane.f32.xlu0 %v1570
    %v1572 = vpop.xlane.xlu0 %1571
    %v1573 = vsel %vm1407, %v1501, -inf
    %1574 = vmax.xlane.f32.xlu0 %v1573
    %v1575 = vpop.xlane.xlu0 %1574
    %v1576 = vsel %vm1407, %v1520, -inf
    %1577 = vmax.xlane.f32.xlu0 %v1576
    %v1578 = vpop.xlane.xlu0 %1577
    %v1579 = vsel %vm1407, %v1539, -inf
    %1580 = vmax.xlane.f32.xlu0 %v1579
    %v1581 = vpop.xlane.xlu0 %1580
    %v1582 = vsel %vm1407, %v1558, -inf
    %1583 = vmax.xlane.f32.xlu0 %v1582
    %v1584 = vpop.xlane.xlu0 %1583
    %v1585 = vsub.f32 %v1425, %v1563
    %v1586 = vsub.f32 %v1444, %v1566
    %v1587 = vsub.f32 %v1463, %v1569
    %v1588 = vsub.f32 %v1482, %v1572
    %v1589 = vsub.f32 %v1501, %v1575
    %v1590 = vsub.f32 %v1520, %v1578
    %v1591 = vsub.f32 %v1539, %v1581
    %v1592 = vsub.f32 %v1558, %v1584
    %v1593 = vmul.f32 %v1585, 1.442695
    %v1594 = vpow.pop %v1593
    %v1595 = vmul.f32 %v1586, 1.442695
    %v1596 = vpow.pop %v1595
    %v1597 = vmul.f32 %v1587, 1.442695
    %v1598 = vpow.pop %v1597
    %v1599 = vmul.f32 %v1588, 1.442695
    %v1600 = vpow.pop %v1599
    %v1601 = vmul.f32 %v1589, 1.442695
    %v1602 = vpow.pop %v1601
    %v1603 = vmul.f32 %v1590, 1.442695
    %v1604 = vpow.pop %v1603
    %v1605 = vmul.f32 %v1591, 1.442695
    %v1606 = vpow.pop %v1605
    %v1607 = vmul.f32 %v1592, 1.442695
    %v1608 = vpow.pop %v1607
    %v1609 = vsel %vm1407, %v1594, 0.0
    %1610 = vadd.xlane.f32.xlu0 %v1609
    %v1611 = vpop.xlane.xlu0 %1610
    %v1612 = vsel %vm1407, %v1596, 0.0
    %1613 = vadd.xlane.f32.xlu0 %v1612
    %v1614 = vpop.xlane.xlu0 %1613
    %v1615 = vsel %vm1407, %v1598, 0.0
    %1616 = vadd.xlane.f32.xlu0 %v1615
    %v1617 = vpop.xlane.xlu0 %1616
    %v1618 = vsel %vm1407, %v1600, 0.0
    %1619 = vadd.xlane.f32.xlu0 %v1618
    %v1620 = vpop.xlane.xlu0 %1619
    %v1621 = vsel %vm1407, %v1602, 0.0
    %1622 = vadd.xlane.f32.xlu0 %v1621
    %v1623 = vpop.xlane.xlu0 %1622
    %v1624 = vsel %vm1407, %v1604, 0.0
    %1625 = vadd.xlane.f32.xlu0 %v1624
    %v1626 = vpop.xlane.xlu0 %1625
    %v1627 = vsel %vm1407, %v1606, 0.0
    %1628 = vadd.xlane.f32.xlu0 %v1627
    %v1629 = vpop.xlane.xlu0 %1628
    %v1630 = vsel %vm1407, %v1608, 0.0
    %1631 = vadd.xlane.f32.xlu0 %v1630
    %v1632 = vpop.xlane.xlu0 %1631
    %v1633 = vrcp.pop %v1611
    %v1634 = vrcp.pop %v1614
    %v1635 = vrcp.pop %v1617
    %v1636 = vrcp.pop %v1620
    %v1637 = vrcp.pop %v1623
    %v1638 = vrcp.pop %v1626
    %v1639 = vrcp.pop %v1629
    %v1640 = vrcp.pop %v1632
    %v1641 = vmul.f32 %v1594, %v1633
    %v1642 = vmul.f32 %v1596, %v1634
    %v1643 = vmul.f32 %v1598, %v1635
    %v1644 = vmul.f32 %v1600, %v1636
    %v1645 = vmul.f32 %v1602, %v1637
    %v1646 = vmul.f32 %v1604, %v1638
    %v1647 = vmul.f32 %v1606, %v1639
    %v1648 = vmul.f32 %v1608, %v1640
    %v1649 = vpack.c.bf16 %v1641, %v1641
    %v1650 = vpack.c.bf16 %v1642, %v1642
    %v1651 = vpack.c.bf16 %v1643, %v1643
    %v1652 = vpack.c.bf16 %v1644, %v1644
    %v1653 = vpack.c.bf16 %v1645, %v1645
    %v1654 = vpack.c.bf16 %v1646, %v1646
    %v1655 = vpack.c.bf16 %v1647, %v1647
    %v1656 = vpack.c.bf16 %v1648, %v1648
    %1657 = vxpose.xlu0.c.b16.start [1/8] %v880, 128
    %1658 = vxpose.xlu0.c.b16.cont [2/8] 0, 128
    %1659 = vxpose.xlu0.c.b16.cont [3/8] 0, 128
    %1660 = vxpose.xlu0.c.b16.cont [4/8] 0, 128
    %1661 = vxpose.xlu0.c.b16.cont [5/8] 0, 128
    %1662 = vxpose.xlu0.c.b16.cont [6/8] 0, 128
    %1663 = vxpose.xlu0.c.b16.cont [7/8] 0, 128
    %1664 = vxpose.xlu0.c.b16.end [8/8] 0, 128
    %v1665 = vpop.trf.xlu0
    %v1666 = vpop.trf.xlu0
    %v1667 = vpop.trf.xlu0
    %v1668 = vpop.trf.xlu0
    %v1669 = vpop.trf.xlu0
    %v1670 = vpop.trf.xlu0
    %v1671 = vpop.trf.xlu0
    %v1672 = vpop.trf.xlu0
    %1673 = vxpose.xlu0.c.b16.start [1/8] %v883, 128
    %1674 = vxpose.xlu0.c.b16.cont [2/8] 0, 128
    %1675 = vxpose.xlu0.c.b16.cont [3/8] 0, 128
    %1676 = vxpose.xlu0.c.b16.cont [4/8] 0, 128
    %1677 = vxpose.xlu0.c.b16.cont [5/8] 0, 128
    %1678 = vxpose.xlu0.c.b16.cont [6/8] 0, 128
    %1679 = vxpose.xlu0.c.b16.cont [7/8] 0, 128
    %1680 = vxpose.xlu0.c.b16.end [8/8] 0, 128
    %v1681 = vpop.trf.xlu0
    %v1682 = vpop.trf.xlu0
    %v1683 = vpop.trf.xlu0
    %v1684 = vpop.trf.xlu0
    %v1685 = vpop.trf.xlu0
    %v1686 = vpop.trf.xlu0
    %v1687 = vpop.trf.xlu0
    %v1688 = vpop.trf.xlu0
    %1689 = vxpose.xlu0.c.b16.start [1/8] %v886, 128
    %1690 = vxpose.xlu0.c.b16.cont [2/8] 0, 128
    %1691 = vxpose.xlu0.c.b16.cont [3/8] 0, 128
    %1692 = vxpose.xlu0.c.b16.cont [4/8] 0, 128
    %1693 = vxpose.xlu0.c.b16.cont [5/8] 0, 128
    %1694 = vxpose.xlu0.c.b16.cont [6/8] 0, 128
    %1695 = vxpose.xlu0.c.b16.cont [7/8] 0, 128
    %1696 = vxpose.xlu0.c.b16.end [8/8] 0, 128
    %v1697 = vpop.trf.xlu0
    %v1698 = vpop.trf.xlu0
    %v1699 = vpop.trf.xlu0
    %v1700 = vpop.trf.xlu0
    %v1701 = vpop.trf.xlu0
    %v1702 = vpop.trf.xlu0
    %v1703 = vpop.trf.xlu0
    %v1704 = vpop.trf.xlu0
    %1705 = vxpose.xlu0.c.b16.start [1/8] %v889, 128
    %1706 = vxpose.xlu0.c.b16.cont [2/8] 0, 128
    %1707 = vxpose.xlu0.c.b16.cont [3/8] 0, 128
    %1708 = vxpose.xlu0.c.b16.cont [4/8] 0, 128
    %1709 = vxpose.xlu0.c.b16.cont [5/8] 0, 128
    %1710 = vxpose.xlu0.c.b16.cont [6/8] 0, 128
    %1711 = vxpose.xlu0.c.b16.cont [7/8] 0, 128
    %1712 = vxpose.xlu0.c.b16.end [8/8] 0, 128
    %v1713 = vpop.trf.xlu0
    %v1714 = vpop.trf.xlu0
    %v1715 = vpop.trf.xlu0
    %v1716 = vpop.trf.xlu0
    %v1717 = vpop.trf.xlu0
    %v1718 = vpop.trf.xlu0
    %v1719 = vpop.trf.xlu0
    %v1720 = vpop.trf.xlu0
    %1721 = vxpose.xlu0.c.b16.start [1/8] %v892, 128
    %1722 = vxpose.xlu0.c.b16.cont [2/8] 0, 128
    %1723 = vxpose.xlu0.c.b16.cont [3/8] 0, 128
    %1724 = vxpose.xlu0.c.b16.cont [4/8] 0, 128
    %1725 = vxpose.xlu0.c.b16.cont [5/8] 0, 128
    %1726 = vxpose.xlu0.c.b16.cont [6/8] 0, 128
    %1727 = vxpose.xlu0.c.b16.cont [7/8] 0, 128
    %1728 = vxpose.xlu0.c.b16.end [8/8] 0, 128
    %v1729 = vpop.trf.xlu0
    %v1730 = vpop.trf.xlu0
    %v1731 = vpop.trf.xlu0
    %v1732 = vpop.trf.xlu0
    %v1733 = vpop.trf.xlu0
    %v1734 = vpop.trf.xlu0
    %v1735 = vpop.trf.xlu0
    %v1736 = vpop.trf.xlu0
    %1737 = vxpose.xlu0.c.b16.start [1/8] %v895, 128
    %1738 = vxpose.xlu0.c.b16.cont [2/8] 0, 128
    %1739 = vxpose.xlu0.c.b16.cont [3/8] 0, 128
    %1740 = vxpose.xlu0.c.b16.cont [4/8] 0, 128
    %1741 = vxpose.xlu0.c.b16.cont [5/8] 0, 128
    %1742 = vxpose.xlu0.c.b16.cont [6/8] 0, 128
    %1743 = vxpose.xlu0.c.b16.cont [7/8] 0, 128
    %1744 = vxpose.xlu0.c.b16.end [8/8] 0, 128
    %v1745 = vpop.trf.xlu0
    %v1746 = vpop.trf.xlu0
    %v1747 = vpop.trf.xlu0
    %v1748 = vpop.trf.xlu0
    %v1749 = vpop.trf.xlu0
    %v1750 = vpop.trf.xlu0
    %v1751 = vpop.trf.xlu0
    %v1752 = vpop.trf.xlu0
    %1753 = vxpose.xlu0.c.b16.start [1/8] %v898, 128
    %1754 = vxpose.xlu0.c.b16.cont [2/8] 0, 128
    %1755 = vxpose.xlu0.c.b16.cont [3/8] 0, 128
    %1756 = vxpose.xlu0.c.b16.cont [4/8] 0, 128
    %1757 = vxpose.xlu0.c.b16.cont [5/8] 0, 128
    %1758 = vxpose.xlu0.c.b16.cont [6/8] 0, 128
    %1759 = vxpose.xlu0.c.b16.cont [7/8] 0, 128
    %1760 = vxpose.xlu0.c.b16.end [8/8] 0, 128
    %v1761 = vpop.trf.xlu0
    %v1762 = vpop.trf.xlu0
    %v1763 = vpop.trf.xlu0
    %v1764 = vpop.trf.xlu0
    %v1765 = vpop.trf.xlu0
    %v1766 = vpop.trf.xlu0
    %v1767 = vpop.trf.xlu0
    %v1768 = vpop.trf.xlu0
    %1769 = vxpose.xlu0.c.b16.start [1/8] %v901, 128
    %1770 = vxpose.xlu0.c.b16.cont [2/8] 0, 128
    %1771 = vxpose.xlu0.c.b16.cont [3/8] 0, 128
    %1772 = vxpose.xlu0.c.b16.cont [4/8] 0, 128
    %1773 = vxpose.xlu0.c.b16.cont [5/8] 0, 128
    %1774 = vxpose.xlu0.c.b16.cont [6/8] 0, 128
    %1775 = vxpose.xlu0.c.b16.cont [7/8] 0, 128
    %1776 = vxpose.xlu0.c.b16.end [8/8] 0, 128
    %v1777 = vpop.trf.xlu0
    %v1778 = vpop.trf.xlu0
    %v1779 = vpop.trf.xlu0
    %v1780 = vpop.trf.xlu0
    %v1781 = vpop.trf.xlu0
    %v1782 = vpop.trf.xlu0
    %v1783 = vpop.trf.xlu0
    %v1784 = vpop.trf.xlu0
    %v1785 = vrot.slane %v1729, 4
    %v1786 = vsel %vm903, %v1785, %v1665
    %v1788 = vunpack.c.l.s4 1983009808
    %v1789 = vunpack.c.0.s8 %v1788
    %v1790 = vperm.slane %v1786, %v1789
    %v1791 = vrot.slane %v1761, 4
    %v1792 = vsel %vm903, %v1791, %v1697
    %v1794 = vunpack.c.l.s4 1983009808
    %v1795 = vunpack.c.0.s8 %v1794
    %v1796 = vperm.slane %v1792, %v1795
    %v1797 = vrot.slane %v1796, 4
    %v1798 = vsel %vm903, %v1797, %v1790
    %v1799 = vrot.slane %v1790, 4
    %v1800 = vsel %vm903, %v1796, %v1799
    %v1802 = vunpack.c.l.s4 1934713408
    %v1803 = vunpack.c.0.s8 %v1802
    %v1804 = vperm.slane %v1798, %v1803
    %v1806 = vunpack.c.l.s4 1934713408
    %v1807 = vunpack.c.0.s8 %v1806
    %v1808 = vperm.slane %v1800, %v1807
    %v1809 = vrot.slane %v1804, 4
    %v1810 = vsel %vm903, 0, %v1809
    %v1811 = vrot.slane %v1808, 4
    %v1812 = vsel %vm903, 0, %v1811
    %v1813 = vrot.slane %v1745, 4
    %v1814 = vsel %vm903, %v1813, %v1681
    %v1816 = vunpack.c.l.s4 1983009808
    %v1817 = vunpack.c.0.s8 %v1816
    %v1818 = vperm.slane %v1814, %v1817
    %v1819 = vrot.slane %v1777, 4
    %v1820 = vsel %vm903, %v1819, %v1713
    %v1822 = vunpack.c.l.s4 1983009808
    %v1823 = vunpack.c.0.s8 %v1822
    %v1824 = vperm.slane %v1820, %v1823
    %v1825 = vrot.slane %v1824, 4
    %v1826 = vsel %vm903, %v1825, %v1818
    %v1827 = vrot.slane %v1818, 4
    %v1828 = vsel %vm903, %v1824, %v1827
    %v1830 = vunpack.c.l.s4 1934713408
    %v1831 = vunpack.c.0.s8 %v1830
    %v1832 = vperm.slane %v1826, %v1831
    %v1834 = vunpack.c.l.s4 1934713408
    %v1835 = vunpack.c.0.s8 %v1834
    %v1836 = vperm.slane %v1828, %v1835
    %v1837 = vrot.slane %v1832, 4
    %v1838 = vsel %vm903, 0, %v1837
    %v1839 = vrot.slane %v1836, 4
    %v1840 = vsel %vm903, 0, %v1839
    %v1843 = vpack.i.b16 %v1832, %v1804
    %v1845 = vshrl.u32 %v1804, 16
    %v1846 = vshrl.u32 %v1832, 16
    %v1847 = vpack.i.b16 %v1846, %v1845
    %v1851 = vpack.i.b16 %v1838, %v1810
    %v1853 = vshrl.u32 %v1810, 16
    %v1854 = vshrl.u32 %v1838, 16
    %v1855 = vpack.i.b16 %v1854, %v1853
    %v1859 = vpack.i.b16 %v1836, %v1808
    %v1861 = vshrl.u32 %v1808, 16
    %v1862 = vshrl.u32 %v1836, 16
    %v1863 = vpack.i.b16 %v1862, %v1861
    %v1867 = vpack.i.b16 %v1840, %v1812
    %v1869 = vshrl.u32 %v1812, 16
    %v1870 = vshrl.u32 %v1840, 16
    %v1871 = vpack.i.b16 %v1870, %v1869
    %1873 = vxpose.xlu0.c.b16.start [1/8] %v1843, 128
    %1874 = vxpose.xlu0.c.b16.cont [2/8] 0, 128
    %1875 = vxpose.xlu0.c.b16.cont [3/8] 0, 128
    %1876 = vxpose.xlu0.c.b16.cont [4/8] 0, 128
    %1877 = vxpose.xlu0.c.b16.cont [5/8] 0, 128
    %1878 = vxpose.xlu0.c.b16.cont [6/8] 0, 128
    %1879 = vxpose.xlu0.c.b16.cont [7/8] 0, 128
    %1880 = vxpose.xlu0.c.b16.end [8/8] 0, 128
    %v1881 = vpop.trf.xlu0
    %v1882 = vpop.trf.xlu0
    %v1883 = vpop.trf.xlu0
    %v1884 = vpop.trf.xlu0
    %v1885 = vpop.trf.xlu0
    %v1886 = vpop.trf.xlu0
    %v1887 = vpop.trf.xlu0
    %v1888 = vpop.trf.xlu0
    %1889 = vxpose.xlu0.c.b16.start [1/8] %v1847, 128
    %1890 = vxpose.xlu0.c.b16.cont [2/8] 0, 128
    %1891 = vxpose.xlu0.c.b16.cont [3/8] 0, 128
    %1892 = vxpose.xlu0.c.b16.cont [4/8] 0, 128
    %1893 = vxpose.xlu0.c.b16.cont [5/8] 0, 128
    %1894 = vxpose.xlu0.c.b16.cont [6/8] 0, 128
    %1895 = vxpose.xlu0.c.b16.cont [7/8] 0, 128
    %1896 = vxpose.xlu0.c.b16.end [8/8] 0, 128
    %v1897 = vpop.trf.xlu0
    %v1898 = vpop.trf.xlu0
    %v1899 = vpop.trf.xlu0
    %v1900 = vpop.trf.xlu0
    %v1901 = vpop.trf.xlu0
    %v1902 = vpop.trf.xlu0
    %v1903 = vpop.trf.xlu0
    %v1904 = vpop.trf.xlu0
    %1905 = vxpose.xlu0.c.b16.start [1/8] %v1851, 128
    %1906 = vxpose.xlu0.c.b16.cont [2/8] 0, 128
    %1907 = vxpose.xlu0.c.b16.cont [3/8] 0, 128
    %1908 = vxpose.xlu0.c.b16.cont [4/8] 0, 128
    %1909 = vxpose.xlu0.c.b16.cont [5/8] 0, 128
    %1910 = vxpose.xlu0.c.b16.cont [6/8] 0, 128
    %1911 = vxpose.xlu0.c.b16.cont [7/8] 0, 128
    %1912 = vxpose.xlu0.c.b16.end [8/8] 0, 128
    %v1913 = vpop.trf.xlu0
    %v1914 = vpop.trf.xlu0
    %v1915 = vpop.trf.xlu0
    %v1916 = vpop.trf.xlu0
    %v1917 = vpop.trf.xlu0
    %v1918 = vpop.trf.xlu0
    %v1919 = vpop.trf.xlu0
    %v1920 = vpop.trf.xlu0
    %1921 = vxpose.xlu0.c.b16.start [1/8] %v1855, 128
    %1922 = vxpose.xlu0.c.b16.cont [2/8] 0, 128
    %1923 = vxpose.xlu0.c.b16.cont [3/8] 0, 128
    %1924 = vxpose.xlu0.c.b16.cont [4/8] 0, 128
    %1925 = vxpose.xlu0.c.b16.cont [5/8] 0, 128
    %1926 = vxpose.xlu0.c.b16.cont [6/8] 0, 128
    %1927 = vxpose.xlu0.c.b16.cont [7/8] 0, 128
    %1928 = vxpose.xlu0.c.b16.end [8/8] 0, 128
    %v1929 = vpop.trf.xlu0
    %v1930 = vpop.trf.xlu0
    %v1931 = vpop.trf.xlu0
    %v1932 = vpop.trf.xlu0
    %v1933 = vpop.trf.xlu0
    %v1934 = vpop.trf.xlu0
    %v1935 = vpop.trf.xlu0
    %v1936 = vpop.trf.xlu0
    %1937 = vxpose.xlu0.c.b16.start [1/8] %v1859, 128
    %1938 = vxpose.xlu0.c.b16.cont [2/8] 0, 128
    %1939 = vxpose.xlu0.c.b16.cont [3/8] 0, 128
    %1940 = vxpose.xlu0.c.b16.cont [4/8] 0, 128
    %1941 = vxpose.xlu0.c.b16.cont [5/8] 0, 128
    %1942 = vxpose.xlu0.c.b16.cont [6/8] 0, 128
    %1943 = vxpose.xlu0.c.b16.cont [7/8] 0, 128
    %1944 = vxpose.xlu0.c.b16.end [8/8] 0, 128
    %v1945 = vpop.trf.xlu0
    %v1946 = vpop.trf.xlu0
    %v1947 = vpop.trf.xlu0
    %v1948 = vpop.trf.xlu0
    %v1949 = vpop.trf.xlu0
    %v1950 = vpop.trf.xlu0
    %v1951 = vpop.trf.xlu0
    %v1952 = vpop.trf.xlu0
    %1953 = vxpose.xlu0.c.b16.start [1/8] %v1863, 128
    %1954 = vxpose.xlu0.c.b16.cont [2/8] 0, 128
    %1955 = vxpose.xlu0.c.b16.cont [3/8] 0, 128
    %1956 = vxpose.xlu0.c.b16.cont [4/8] 0, 128
    %1957 = vxpose.xlu0.c.b16.cont [5/8] 0, 128
    %1958 = vxpose.xlu0.c.b16.cont [6/8] 0, 128
    %1959 = vxpose.xlu0.c.b16.cont [7/8] 0, 128
    %1960 = vxpose.xlu0.c.b16.end [8/8] 0, 128
    %v1961 = vpop.trf.xlu0
    %v1962 = vpop.trf.xlu0
    %v1963 = vpop.trf.xlu0
    %v1964 = vpop.trf.xlu0
    %v1965 = vpop.trf.xlu0
    %v1966 = vpop.trf.xlu0
    %v1967 = vpop.trf.xlu0
    %v1968 = vpop.trf.xlu0
    %1969 = vxpose.xlu0.c.b16.start [1/8] %v1867, 128
    %1970 = vxpose.xlu0.c.b16.cont [2/8] 0, 128
    %1971 = vxpose.xlu0.c.b16.cont [3/8] 0, 128
    %1972 = vxpose.xlu0.c.b16.cont [4/8] 0, 128
    %1973 = vxpose.xlu0.c.b16.cont [5/8] 0, 128
    %1974 = vxpose.xlu0.c.b16.cont [6/8] 0, 128
    %1975 = vxpose.xlu0.c.b16.cont [7/8] 0, 128
    %1976 = vxpose.xlu0.c.b16.end [8/8] 0, 128
    %v1977 = vpop.trf.xlu0
    %v1978 = vpop.trf.xlu0
    %v1979 = vpop.trf.xlu0
    %v1980 = vpop.trf.xlu0
    %v1981 = vpop.trf.xlu0
    %v1982 = vpop.trf.xlu0
    %v1983 = vpop.trf.xlu0
    %v1984 = vpop.trf.xlu0
    %1985 = vxpose.xlu0.c.b16.start [1/8] %v1871, 128
    %1986 = vxpose.xlu0.c.b16.cont [2/8] 0, 128
    %1987 = vxpose.xlu0.c.b16.cont [3/8] 0, 128
    %1988 = vxpose.xlu0.c.b16.cont [4/8] 0, 128
    %1989 = vxpose.xlu0.c.b16.cont [5/8] 0, 128
    %1990 = vxpose.xlu0.c.b16.cont [6/8] 0, 128
    %1991 = vxpose.xlu0.c.b16.cont [7/8] 0, 128
    %1992 = vxpose.xlu0.c.b16.end [8/8] 0, 128
    %v1993 = vpop.trf.xlu0
    %v1994 = vpop.trf.xlu0
    %v1995 = vpop.trf.xlu0
    %v1996 = vpop.trf.xlu0
    %v1997 = vpop.trf.xlu0
    %v1998 = vpop.trf.xlu0
    %v1999 = vpop.trf.xlu0
    %v2000 = vpop.trf.xlu0
    %v2001 = vrot.slane %v1945, 4
    %v2002 = vsel %vm903, %v2001, %v1881
    %v2004 = vunpack.c.l.s4 1983009808
    %v2005 = vunpack.c.0.s8 %v2004
    %v2006 = vperm.slane %v2002, %v2005
    %v2007 = vrot.slane %v1977, 4
    %v2008 = vsel %vm903, %v2007, %v1913
    %v2010 = vunpack.c.l.s4 1983009808
    %v2011 = vunpack.c.0.s8 %v2010
    %v2012 = vperm.slane %v2008, %v2011
    %v2013 = vrot.slane %v2012, 4
    %v2014 = vsel %vm903, %v2013, %v2006
    %v2015 = vrot.slane %v2006, 4
    %v2016 = vsel %vm903, %v2012, %v2015
    %v2018 = vunpack.c.l.s4 1934713408
    %v2019 = vunpack.c.0.s8 %v2018
    %v2020 = vperm.slane %v2014, %v2019
    %v2022 = vunpack.c.l.s4 1934713408
    %v2023 = vunpack.c.0.s8 %v2022
    %v2024 = vperm.slane %v2016, %v2023
    %v2025 = vrot.slane %v2020, 4
    %v2026 = vsel %vm903, 0, %v2025
    %v2027 = vrot.slane %v2024, 4
    %v2028 = vsel %vm903, 0, %v2027
    %v2029 = vrot.slane %v1961, 4
    %v2030 = vsel %vm903, %v2029, %v1897
    %v2032 = vunpack.c.l.s4 1983009808
    %v2033 = vunpack.c.0.s8 %v2032
    %v2034 = vperm.slane %v2030, %v2033
    %v2035 = vrot.slane %v1993, 4
    %v2036 = vsel %vm903, %v2035, %v1929
    %v2038 = vunpack.c.l.s4 1983009808
    %v2039 = vunpack.c.0.s8 %v2038
    %v2040 = vperm.slane %v2036, %v2039
    %v2041 = vrot.slane %v2040, 4
    %v2042 = vsel %vm903, %v2041, %v2034
    %v2043 = vrot.slane %v2034, 4
    %v2044 = vsel %vm903, %v2040, %v2043
    %v2046 = vunpack.c.l.s4 1934713408
    %v2047 = vunpack.c.0.s8 %v2046
    %v2048 = vperm.slane %v2042, %v2047
    %v2050 = vunpack.c.l.s4 1934713408
    %v2051 = vunpack.c.0.s8 %v2050
    %v2052 = vperm.slane %v2044, %v2051
    %v2053 = vrot.slane %v2048, 4
    %v2054 = vsel %vm903, 0, %v2053
    %v2055 = vrot.slane %v2052, 4
    %v2056 = vsel %vm903, 0, %v2055
    %v2059 = vpack.i.b16 %v2048, %v2020
    %v2060 = vshrl.u32 %v2020, 16
    %v2061 = vshrl.u32 %v2048, 16
    %v2062 = vpack.i.b16 %v2061, %v2060
    %v2065 = vpack.i.b16 %v2054, %v2026
    %v2066 = vshrl.u32 %v2026, 16
    %v2067 = vshrl.u32 %v2054, 16
    %v2068 = vpack.i.b16 %v2067, %v2066
    %v2071 = vpack.i.b16 %v2052, %v2024
    %v2072 = vshrl.u32 %v2024, 16
    %v2073 = vshrl.u32 %v2052, 16
    %v2074 = vpack.i.b16 %v2073, %v2072
    %v2077 = vpack.i.b16 %v2056, %v2028
    %v2078 = vshrl.u32 %v2028, 16
    %v2079 = vshrl.u32 %v2056, 16
    %v2080 = vpack.i.b16 %v2079, %v2078
    %v2082 = vsel %vm1407, %v2059, 0
    %v2085 = vsel %vm1407, %v1649, 0
    %2087 = vmatpush.bf16.xpose.msra.mxu0 0
    %2088 = vmatpush.bf16.xpose.msra.mxu0 0
    %2089 = vmatpush.bf16.xpose.msra.mxu0 0
    %2090 = vmatpush.bf16.xpose.msra.mxu0 0
    %2091 = vmatpush.bf16.xpose.msra.mxu0 0
    %2092 = vmatpush.bf16.xpose.msra.mxu0 0
    %2093 = vmatpush.bf16.xpose.msra.mxu0 0
    %2094 = vmatpush.bf16.xpose.msra.mxu0 %v2085
    %2095 = vmatmul.bf16.gmra.mxu0 %v2082
    %v2096 = vpop.f32.mrf.mxu0
    %v2097 = vadd.f32 0.0, %v2096
    %v2098 = vpop.f32.mrf.mxu0
    %2099 = vdwg.mxu0
    %v2101 = vsel %vm1407, %v2062, 0
    %v2104 = vsel %vm1407, %v1650, 0
    %2106 = vmatpush.bf16.xpose.msra.mxu0 0
    %2107 = vmatpush.bf16.xpose.msra.mxu0 0
    %2108 = vmatpush.bf16.xpose.msra.mxu0 0
    %2109 = vmatpush.bf16.xpose.msra.mxu0 0
    %2110 = vmatpush.bf16.xpose.msra.mxu0 0
    %2111 = vmatpush.bf16.xpose.msra.mxu0 0
    %2112 = vmatpush.bf16.xpose.msra.mxu0 0
    %2113 = vmatpush.bf16.xpose.msra.mxu0 %v2104
    %2114 = vmatmul.bf16.gmra.mxu0 %v2101
    %v2115 = vpop.f32.mrf.mxu0
    %v2116 = vadd.f32 0.0, %v2115
    %v2117 = vpop.f32.mrf.mxu0
    %2118 = vdwg.mxu0
    %v2120 = vsel %vm1407, %v2065, 0
    %v2123 = vsel %vm1407, %v1651, 0
    %2125 = vmatpush.bf16.xpose.msra.mxu0 0
    %2126 = vmatpush.bf16.xpose.msra.mxu0 0
    %2127 = vmatpush.bf16.xpose.msra.mxu0 0
    %2128 = vmatpush.bf16.xpose.msra.mxu0 0
    %2129 = vmatpush.bf16.xpose.msra.mxu0 0
    %2130 = vmatpush.bf16.xpose.msra.mxu0 0
    %2131 = vmatpush.bf16.xpose.msra.mxu0 0
    %2132 = vmatpush.bf16.xpose.msra.mxu0 %v2123
    %2133 = vmatmul.bf16.gmra.mxu0 %v2120
    %v2134 = vpop.f32.mrf.mxu0
    %v2135 = vadd.f32 0.0, %v2134
    %v2136 = vpop.f32.mrf.mxu0
    %2137 = vdwg.mxu0
    %v2139 = vsel %vm1407, %v2068, 0
    %v2142 = vsel %vm1407, %v1652, 0
    %2144 = vmatpush.bf16.xpose.msra.mxu0 0
    %2145 = vmatpush.bf16.xpose.msra.mxu0 0
    %2146 = vmatpush.bf16.xpose.msra.mxu0 0
    %2147 = vmatpush.bf16.xpose.msra.mxu0 0
    %2148 = vmatpush.bf16.xpose.msra.mxu0 0
    %2149 = vmatpush.bf16.xpose.msra.mxu0 0
    %2150 = vmatpush.bf16.xpose.msra.mxu0 0
    %2151 = vmatpush.bf16.xpose.msra.mxu0 %v2142
    %2152 = vmatmul.bf16.gmra.mxu0 %v2139
    %v2153 = vpop.f32.mrf.mxu0
    %v2154 = vadd.f32 0.0, %v2153
    %v2155 = vpop.f32.mrf.mxu0
    %2156 = vdwg.mxu0
    %v2158 = vsel %vm1407, %v2071, 0
    %v2161 = vsel %vm1407, %v1653, 0
    %2163 = vmatpush.bf16.xpose.msra.mxu0 0
    %2164 = vmatpush.bf16.xpose.msra.mxu0 0
    %2165 = vmatpush.bf16.xpose.msra.mxu0 0
    %2166 = vmatpush.bf16.xpose.msra.mxu0 0
    %2167 = vmatpush.bf16.xpose.msra.mxu0 0
    %2168 = vmatpush.bf16.xpose.msra.mxu0 0
    %2169 = vmatpush.bf16.xpose.msra.mxu0 0
    %2170 = vmatpush.bf16.xpose.msra.mxu0 %v2161
    %2171 = vmatmul.bf16.gmra.mxu0 %v2158
    %v2172 = vpop.f32.mrf.mxu0
    %v2173 = vadd.f32 0.0, %v2172
    %v2174 = vpop.f32.mrf.mxu0
    %2175 = vdwg.mxu0
    %v2177 = vsel %vm1407, %v2074, 0
    %v2180 = vsel %vm1407, %v1654, 0
    %2182 = vmatpush.bf16.xpose.msra.mxu0 0
    %2183 = vmatpush.bf16.xpose.msra.mxu0 0
    %2184 = vmatpush.bf16.xpose.msra.mxu0 0
    %2185 = vmatpush.bf16.xpose.msra.mxu0 0
    %2186 = vmatpush.bf16.xpose.msra.mxu0 0
    %2187 = vmatpush.bf16.xpose.msra.mxu0 0
    %2188 = vmatpush.bf16.xpose.msra.mxu0 0
    %2189 = vmatpush.bf16.xpose.msra.mxu0 %v2180
    %2190 = vmatmul.bf16.gmra.mxu0 %v2177
    %v2191 = vpop.f32.mrf.mxu0
    %v2192 = vadd.f32 0.0, %v2191
    %v2193 = vpop.f32.mrf.mxu0
    %2194 = vdwg.mxu0
    %v2196 = vsel %vm1407, %v2077, 0
    %v2199 = vsel %vm1407, %v1655, 0
    %2201 = vmatpush.bf16.xpose.msra.mxu0 0
    %2202 = vmatpush.bf16.xpose.msra.mxu0 0
    %2203 = vmatpush.bf16.xpose.msra.mxu0 0
    %2204 = vmatpush.bf16.xpose.msra.mxu0 0
    %2205 = vmatpush.bf16.xpose.msra.mxu0 0
    %2206 = vmatpush.bf16.xpose.msra.mxu0 0
    %2207 = vmatpush.bf16.xpose.msra.mxu0 0
    %2208 = vmatpush.bf16.xpose.msra.mxu0 %v2199
    %2209 = vmatmul.bf16.gmra.mxu0 %v2196
    %v2210 = vpop.f32.mrf.mxu0
    %v2211 = vadd.f32 0.0, %v2210
    %v2212 = vpop.f32.mrf.mxu0
    %2213 = vdwg.mxu0
    %v2215 = vsel %vm1407, %v2080, 0
    %v2218 = vsel %vm1407, %v1656, 0
    %2220 = vmatpush.bf16.xpose.msra.mxu0 0
    %2221 = vmatpush.bf16.xpose.msra.mxu0 0
    %2222 = vmatpush.bf16.xpose.msra.mxu0 0
    %2223 = vmatpush.bf16.xpose.msra.mxu0 0
    %2224 = vmatpush.bf16.xpose.msra.mxu0 0
    %2225 = vmatpush.bf16.xpose.msra.mxu0 0
    %2226 = vmatpush.bf16.xpose.msra.mxu0 0
    %2227 = vmatpush.bf16.xpose.msra.mxu0 %v2218
    %2228 = vmatmul.bf16.gmra.mxu0 %v2215
    %v2229 = vpop.f32.mrf.mxu0
    %v2230 = vadd.f32 0.0, %v2229
    %v2231 = vpop.f32.mrf.mxu0
    %2232 = vdwg.mxu0
    %2233 = vxpose.xlu0.b32.start [1/16] %v2097, 128
    %2234 = vxpose.xlu0.b32.cont [2/16] 0.0, 128
    %2235 = vxpose.xlu0.b32.cont [3/16] 0.0, 128
    %2236 = vxpose.xlu0.b32.cont [4/16] 0.0, 128
    %2237 = vxpose.xlu0.b32.cont [5/16] 0.0, 128
    %2238 = vxpose.xlu0.b32.cont [6/16] 0.0, 128
    %2239 = vxpose.xlu0.b32.cont [7/16] 0.0, 128
    %2240 = vxpose.xlu0.b32.cont [8/16] 0.0, 128
    %2241 = vxpose.xlu0.b32.cont [9/16] 0.0, 128
    %2242 = vxpose.xlu0.b32.cont [10/16] 0.0, 128
    %2243 = vxpose.xlu0.b32.cont [11/16] 0.0, 128
    %2244 = vxpose.xlu0.b32.cont [12/16] 0.0, 128
    %2245 = vxpose.xlu0.b32.cont [13/16] 0.0, 128
    %2246 = vxpose.xlu0.b32.cont [14/16] 0.0, 128
    %2247 = vxpose.xlu0.b32.cont [15/16] 0.0, 128
    %2248 = vxpose.xlu0.b32.end [16/16] 0.0, 128
    %v2249 = vpop.trf.xlu0
    %v2250 = vpop.trf.xlu0
    %v2251 = vpop.trf.xlu0
    %v2252 = vpop.trf.xlu0
    %v2253 = vpop.trf.xlu0
    %v2254 = vpop.trf.xlu0
    %v2255 = vpop.trf.xlu0
    %v2256 = vpop.trf.xlu0
    %v2257 = vpop.trf.xlu0
    %v2258 = vpop.trf.xlu0
    %v2259 = vpop.trf.xlu0
    %v2260 = vpop.trf.xlu0
    %v2261 = vpop.trf.xlu0
    %v2262 = vpop.trf.xlu0
    %v2263 = vpop.trf.xlu0
    %v2264 = vpop.trf.xlu0
    %2265 = vxpose.xlu0.b32.start [1/16] %v2116, 128
    %2266 = vxpose.xlu0.b32.cont [2/16] 0.0, 128
    %2267 = vxpose.xlu0.b32.cont [3/16] 0.0, 128
    %2268 = vxpose.xlu0.b32.cont [4/16] 0.0, 128
    %2269 = vxpose.xlu0.b32.cont [5/16] 0.0, 128
    %2270 = vxpose.xlu0.b32.cont [6/16] 0.0, 128
    %2271 = vxpose.xlu0.b32.cont [7/16] 0.0, 128
    %2272 = vxpose.xlu0.b32.cont [8/16] 0.0, 128
    %2273 = vxpose.xlu0.b32.cont [9/16] 0.0, 128
    %2274 = vxpose.xlu0.b32.cont [10/16] 0.0, 128
    %2275 = vxpose.xlu0.b32.cont [11/16] 0.0, 128
    %2276 = vxpose.xlu0.b32.cont [12/16] 0.0, 128
    %2277 = vxpose.xlu0.b32.cont [13/16] 0.0, 128
    %2278 = vxpose.xlu0.b32.cont [14/16] 0.0, 128
    %2279 = vxpose.xlu0.b32.cont [15/16] 0.0, 128
    %2280 = vxpose.xlu0.b32.end [16/16] 0.0, 128
    %v2281 = vpop.trf.xlu0
    %v2282 = vpop.trf.xlu0
    %v2283 = vpop.trf.xlu0
    %v2284 = vpop.trf.xlu0
    %v2285 = vpop.trf.xlu0
    %v2286 = vpop.trf.xlu0
    %v2287 = vpop.trf.xlu0
    %v2288 = vpop.trf.xlu0
    %v2289 = vpop.trf.xlu0
    %v2290 = vpop.trf.xlu0
    %v2291 = vpop.trf.xlu0
    %v2292 = vpop.trf.xlu0
    %v2293 = vpop.trf.xlu0
    %v2294 = vpop.trf.xlu0
    %v2295 = vpop.trf.xlu0
    %v2296 = vpop.trf.xlu0
    %2297 = vxpose.xlu0.b32.start [1/16] %v2135, 128
    %2298 = vxpose.xlu0.b32.cont [2/16] 0.0, 128
    %2299 = vxpose.xlu0.b32.cont [3/16] 0.0, 128
    %2300 = vxpose.xlu0.b32.cont [4/16] 0.0, 128
    %2301 = vxpose.xlu0.b32.cont [5/16] 0.0, 128
    %2302 = vxpose.xlu0.b32.cont [6/16] 0.0, 128
    %2303 = vxpose.xlu0.b32.cont [7/16] 0.0, 128
    %2304 = vxpose.xlu0.b32.cont [8/16] 0.0, 128
    %2305 = vxpose.xlu0.b32.cont [9/16] 0.0, 128
    %2306 = vxpose.xlu0.b32.cont [10/16] 0.0, 128
    %2307 = vxpose.xlu0.b32.cont [11/16] 0.0, 128
    %2308 = vxpose.xlu0.b32.cont [12/16] 0.0, 128
    %2309 = vxpose.xlu0.b32.cont [13/16] 0.0, 128
    %2310 = vxpose.xlu0.b32.cont [14/16] 0.0, 128
    %2311 = vxpose.xlu0.b32.cont [15/16] 0.0, 128
    %2312 = vxpose.xlu0.b32.end [16/16] 0.0, 128
    %v2313 = vpop.trf.xlu0
    %v2314 = vpop.trf.xlu0
    %v2315 = vpop.trf.xlu0
    %v2316 = vpop.trf.xlu0
    %v2317 = vpop.trf.xlu0
    %v2318 = vpop.trf.xlu0
    %v2319 = vpop.trf.xlu0
    %v2320 = vpop.trf.xlu0
    %v2321 = vpop.trf.xlu0
    %v2322 = vpop.trf.xlu0
    %v2323 = vpop.trf.xlu0
    %v2324 = vpop.trf.xlu0
    %v2325 = vpop.trf.xlu0
    %v2326 = vpop.trf.xlu0
    %v2327 = vpop.trf.xlu0
    %v2328 = vpop.trf.xlu0
    %2329 = vxpose.xlu0.b32.start [1/16] %v2154, 128
    %2330 = vxpose.xlu0.b32.cont [2/16] 0.0, 128
    %2331 = vxpose.xlu0.b32.cont [3/16] 0.0, 128
    %2332 = vxpose.xlu0.b32.cont [4/16] 0.0, 128
    %2333 = vxpose.xlu0.b32.cont [5/16] 0.0, 128
    %2334 = vxpose.xlu0.b32.cont [6/16] 0.0, 128
    %2335 = vxpose.xlu0.b32.cont [7/16] 0.0, 128
    %2336 = vxpose.xlu0.b32.cont [8/16] 0.0, 128
    %2337 = vxpose.xlu0.b32.cont [9/16] 0.0, 128
    %2338 = vxpose.xlu0.b32.cont [10/16] 0.0, 128
    %2339 = vxpose.xlu0.b32.cont [11/16] 0.0, 128
    %2340 = vxpose.xlu0.b32.cont [12/16] 0.0, 128
    %2341 = vxpose.xlu0.b32.cont [13/16] 0.0, 128
    %2342 = vxpose.xlu0.b32.cont [14/16] 0.0, 128
    %2343 = vxpose.xlu0.b32.cont [15/16] 0.0, 128
    %2344 = vxpose.xlu0.b32.end [16/16] 0.0, 128
    %v2345 = vpop.trf.xlu0
    %v2346 = vpop.trf.xlu0
    %v2347 = vpop.trf.xlu0
    %v2348 = vpop.trf.xlu0
    %v2349 = vpop.trf.xlu0
    %v2350 = vpop.trf.xlu0
    %v2351 = vpop.trf.xlu0
    %v2352 = vpop.trf.xlu0
    %v2353 = vpop.trf.xlu0
    %v2354 = vpop.trf.xlu0
    %v2355 = vpop.trf.xlu0
    %v2356 = vpop.trf.xlu0
    %v2357 = vpop.trf.xlu0
    %v2358 = vpop.trf.xlu0
    %v2359 = vpop.trf.xlu0
    %v2360 = vpop.trf.xlu0
    %2361 = vxpose.xlu0.b32.start [1/16] %v2173, 128
    %2362 = vxpose.xlu0.b32.cont [2/16] 0.0, 128
    %2363 = vxpose.xlu0.b32.cont [3/16] 0.0, 128
    %2364 = vxpose.xlu0.b32.cont [4/16] 0.0, 128
    %2365 = vxpose.xlu0.b32.cont [5/16] 0.0, 128
    %2366 = vxpose.xlu0.b32.cont [6/16] 0.0, 128
    %2367 = vxpose.xlu0.b32.cont [7/16] 0.0, 128
    %2368 = vxpose.xlu0.b32.cont [8/16] 0.0, 128
    %2369 = vxpose.xlu0.b32.cont [9/16] 0.0, 128
    %2370 = vxpose.xlu0.b32.cont [10/16] 0.0, 128
    %2371 = vxpose.xlu0.b32.cont [11/16] 0.0, 128
    %2372 = vxpose.xlu0.b32.cont [12/16] 0.0, 128
    %2373 = vxpose.xlu0.b32.cont [13/16] 0.0, 128
    %2374 = vxpose.xlu0.b32.cont [14/16] 0.0, 128
    %2375 = vxpose.xlu0.b32.cont [15/16] 0.0, 128
    %2376 = vxpose.xlu0.b32.end [16/16] 0.0, 128
    %v2377 = vpop.trf.xlu0
    %v2378 = vpop.trf.xlu0
    %v2379 = vpop.trf.xlu0
    %v2380 = vpop.trf.xlu0
    %v2381 = vpop.trf.xlu0
    %v2382 = vpop.trf.xlu0
    %v2383 = vpop.trf.xlu0
    %v2384 = vpop.trf.xlu0
    %v2385 = vpop.trf.xlu0
    %v2386 = vpop.trf.xlu0
    %v2387 = vpop.trf.xlu0
    %v2388 = vpop.trf.xlu0
    %v2389 = vpop.trf.xlu0
    %v2390 = vpop.trf.xlu0
    %v2391 = vpop.trf.xlu0
    %v2392 = vpop.trf.xlu0
    %2393 = vxpose.xlu0.b32.start [1/16] %v2192, 128
    %2394 = vxpose.xlu0.b32.cont [2/16] 0.0, 128
    %2395 = vxpose.xlu0.b32.cont [3/16] 0.0, 128
    %2396 = vxpose.xlu0.b32.cont [4/16] 0.0, 128
    %2397 = vxpose.xlu0.b32.cont [5/16] 0.0, 128
    %2398 = vxpose.xlu0.b32.cont [6/16] 0.0, 128
    %2399 = vxpose.xlu0.b32.cont [7/16] 0.0, 128
    %2400 = vxpose.xlu0.b32.cont [8/16] 0.0, 128
    %2401 = vxpose.xlu0.b32.cont [9/16] 0.0, 128
    %2402 = vxpose.xlu0.b32.cont [10/16] 0.0, 128
    %2403 = vxpose.xlu0.b32.cont [11/16] 0.0, 128
    %2404 = vxpose.xlu0.b32.cont [12/16] 0.0, 128
    %2405 = vxpose.xlu0.b32.cont [13/16] 0.0, 128
    %2406 = vxpose.xlu0.b32.cont [14/16] 0.0, 128
    %2407 = vxpose.xlu0.b32.cont [15/16] 0.0, 128
    %2408 = vxpose.xlu0.b32.end [16/16] 0.0, 128
    %v2409 = vpop.trf.xlu0
    %v2410 = vpop.trf.xlu0
    %v2411 = vpop.trf.xlu0
    %v2412 = vpop.trf.xlu0
    %v2413 = vpop.trf.xlu0
    %v2414 = vpop.trf.xlu0
    %v2415 = vpop.trf.xlu0
    %v2416 = vpop.trf.xlu0
    %v2417 = vpop.trf.xlu0
    %v2418 = vpop.trf.xlu0
    %v2419 = vpop.trf.xlu0
    %v2420 = vpop.trf.xlu0
    %v2421 = vpop.trf.xlu0
    %v2422 = vpop.trf.xlu0
    %v2423 = vpop.trf.xlu0
    %v2424 = vpop.trf.xlu0
    %2425 = vxpose.xlu0.b32.start [1/16] %v2211, 128
    %2426 = vxpose.xlu0.b32.cont [2/16] 0.0, 128
    %2427 = vxpose.xlu0.b32.cont [3/16] 0.0, 128
    %2428 = vxpose.xlu0.b32.cont [4/16] 0.0, 128
    %2429 = vxpose.xlu0.b32.cont [5/16] 0.0, 128
    %2430 = vxpose.xlu0.b32.cont [6/16] 0.0, 128
    %2431 = vxpose.xlu0.b32.cont [7/16] 0.0, 128
    %2432 = vxpose.xlu0.b32.cont [8/16] 0.0, 128
    %2433 = vxpose.xlu0.b32.cont [9/16] 0.0, 128
    %2434 = vxpose.xlu0.b32.cont [10/16] 0.0, 128
    %2435 = vxpose.xlu0.b32.cont [11/16] 0.0, 128
    %2436 = vxpose.xlu0.b32.cont [12/16] 0.0, 128
    %2437 = vxpose.xlu0.b32.cont [13/16] 0.0, 128
    %2438 = vxpose.xlu0.b32.cont [14/16] 0.0, 128
    %2439 = vxpose.xlu0.b32.cont [15/16] 0.0, 128
    %2440 = vxpose.xlu0.b32.end [16/16] 0.0, 128
    %v2441 = vpop.trf.xlu0
    %v2442 = vpop.trf.xlu0
    %v2443 = vpop.trf.xlu0
    %v2444 = vpop.trf.xlu0
    %v2445 = vpop.trf.xlu0
    %v2446 = vpop.trf.xlu0
    %v2447 = vpop.trf.xlu0
    %v2448 = vpop.trf.xlu0
    %v2449 = vpop.trf.xlu0
    %v2450 = vpop.trf.xlu0
    %v2451 = vpop.trf.xlu0
    %v2452 = vpop.trf.xlu0
    %v2453 = vpop.trf.xlu0
    %v2454 = vpop.trf.xlu0
    %v2455 = vpop.trf.xlu0
    %v2456 = vpop.trf.xlu0
    %2457 = vxpose.xlu0.b32.start [1/16] %v2230, 128
    %2458 = vxpose.xlu0.b32.cont [2/16] 0.0, 128
    %2459 = vxpose.xlu0.b32.cont [3/16] 0.0, 128
    %2460 = vxpose.xlu0.b32.cont [4/16] 0.0, 128
    %2461 = vxpose.xlu0.b32.cont [5/16] 0.0, 128
    %2462 = vxpose.xlu0.b32.cont [6/16] 0.0, 128
    %2463 = vxpose.xlu0.b32.cont [7/16] 0.0, 128
    %2464 = vxpose.xlu0.b32.cont [8/16] 0.0, 128
    %2465 = vxpose.xlu0.b32.cont [9/16] 0.0, 128
    %2466 = vxpose.xlu0.b32.cont [10/16] 0.0, 128
    %2467 = vxpose.xlu0.b32.cont [11/16] 0.0, 128
    %2468 = vxpose.xlu0.b32.cont [12/16] 0.0, 128
    %2469 = vxpose.xlu0.b32.cont [13/16] 0.0, 128
    %2470 = vxpose.xlu0.b32.cont [14/16] 0.0, 128
    %2471 = vxpose.xlu0.b32.cont [15/16] 0.0, 128
    %2472 = vxpose.xlu0.b32.end [16/16] 0.0, 128
    %v2473 = vpop.trf.xlu0
    %v2474 = vpop.trf.xlu0
    %v2475 = vpop.trf.xlu0
    %v2476 = vpop.trf.xlu0
    %v2477 = vpop.trf.xlu0
    %v2478 = vpop.trf.xlu0
    %v2479 = vpop.trf.xlu0
    %v2480 = vpop.trf.xlu0
    %v2481 = vpop.trf.xlu0
    %v2482 = vpop.trf.xlu0
    %v2483 = vpop.trf.xlu0
    %v2484 = vpop.trf.xlu0
    %v2485 = vpop.trf.xlu0
    %v2486 = vpop.trf.xlu0
    %v2487 = vpop.trf.xlu0
    %v2488 = vpop.trf.xlu0
    %v2489 = vrot.slane %v2313, 4
    %v2490 = vsel %vm542, %v2489, %v2249
    %v2491 = vrot.slane %v2249, 4
    %v2492 = vsel %vm542, %v2313, %v2491
    %v2494 = vunpack.c.l.s4 1983009808
    %v2495 = vunpack.c.0.s8 %v2494
    %v2496 = vperm.slane %v2490, %v2495
    %v2498 = vunpack.c.l.s4 1983009808
    %v2499 = vunpack.c.0.s8 %v2498
    %v2500 = vperm.slane %v2492, %v2499
    %v2501 = vrot.slane %v2345, 4
    %v2502 = vsel %vm542, %v2501, %v2281
    %v2503 = vrot.slane %v2281, 4
    %v2504 = vsel %vm542, %v2345, %v2503
    %v2506 = vunpack.c.l.s4 1983009808
    %v2507 = vunpack.c.0.s8 %v2506
    %v2508 = vperm.slane %v2502, %v2507
    %v2510 = vunpack.c.l.s4 1983009808
    %v2511 = vunpack.c.0.s8 %v2510
    %v2512 = vperm.slane %v2504, %v2511
    %v2513 = vrot.slane %v2441, 4
    %v2514 = vsel %vm542, %v2513, %v2377
    %v2515 = vrot.slane %v2377, 4
    %v2516 = vsel %vm542, %v2441, %v2515
    %v2518 = vunpack.c.l.s4 1983009808
    %v2519 = vunpack.c.0.s8 %v2518
    %v2520 = vperm.slane %v2514, %v2519
    %v2522 = vunpack.c.l.s4 1983009808
    %v2523 = vunpack.c.0.s8 %v2522
    %v2524 = vperm.slane %v2516, %v2523
    %v2525 = vrot.slane %v2473, 4
    %v2526 = vsel %vm542, %v2525, %v2409
    %v2527 = vrot.slane %v2409, 4
    %v2528 = vsel %vm542, %v2473, %v2527
    %v2530 = vunpack.c.l.s4 1983009808
    %v2531 = vunpack.c.0.s8 %v2530
    %v2532 = vperm.slane %v2526, %v2531
    %v2534 = vunpack.c.l.s4 1983009808
    %v2535 = vunpack.c.0.s8 %v2534
    %v2536 = vperm.slane %v2528, %v2535
    %v2537 = vrot.slane %v2508, 4
    %v2538 = vsel %vm542, %v2537, %v2496
    %v2539 = vrot.slane %v2496, 4
    %v2540 = vsel %vm542, %v2508, %v2539
    %v2542 = vunpack.c.l.s4 1934713408
    %v2543 = vunpack.c.0.s8 %v2542
    %v2544 = vperm.slane %v2538, %v2543
    %v2546 = vunpack.c.l.s4 1934713408
    %v2547 = vunpack.c.0.s8 %v2546
    %v2548 = vperm.slane %v2540, %v2547
    %v2549 = vrot.slane %v2512, 4
    %v2550 = vsel %vm542, %v2549, %v2500
    %v2551 = vrot.slane %v2500, 4
    %v2552 = vsel %vm542, %v2512, %v2551
    %v2554 = vunpack.c.l.s4 1934713408
    %v2555 = vunpack.c.0.s8 %v2554
    %v2556 = vperm.slane %v2550, %v2555
    %v2558 = vunpack.c.l.s4 1934713408
    %v2559 = vunpack.c.0.s8 %v2558
    %v2560 = vperm.slane %v2552, %v2559
    %v2561 = vrot.slane %v2532, 4
    %v2562 = vsel %vm542, %v2561, %v2520
    %v2563 = vrot.slane %v2520, 4
    %v2564 = vsel %vm542, %v2532, %v2563
    %v2566 = vunpack.c.l.s4 1934713408
    %v2567 = vunpack.c.0.s8 %v2566
    %v2568 = vperm.slane %v2562, %v2567
    %v2570 = vunpack.c.l.s4 1934713408
    %v2571 = vunpack.c.0.s8 %v2570
    %v2572 = vperm.slane %v2564, %v2571
    %v2573 = vrot.slane %v2536, 4
    %v2574 = vsel %vm542, %v2573, %v2524
    %v2575 = vrot.slane %v2524, 4
    %v2576 = vsel %vm542, %v2536, %v2575
    %v2578 = vunpack.c.l.s4 1934713408
    %v2579 = vunpack.c.0.s8 %v2578
    %v2580 = vperm.slane %v2574, %v2579
    %v2582 = vunpack.c.l.s4 1934713408
    %v2583 = vunpack.c.0.s8 %v2582
    %v2584 = vperm.slane %v2576, %v2583
    %v2585 = vrot.slane %v2568, 4
    %v2586 = vsel %vm542, %v2585, %v2544
    %v2587 = vrot.slane %v2544, 4
    %v2588 = vsel %vm542, %v2568, %v2587
    %v2589 = vrot.slane %v2572, 4
    %v2590 = vsel %vm542, %v2589, %v2548
    %v2591 = vrot.slane %v2548, 4
    %v2592 = vsel %vm542, %v2572, %v2591
    %v2593 = vrot.slane %v2580, 4
    %v2594 = vsel %vm542, %v2593, %v2556
    %v2595 = vrot.slane %v2556, 4
    %v2596 = vsel %vm542, %v2580, %v2595
    %v2597 = vrot.slane %v2584, 4
    %v2598 = vsel %vm542, %v2597, %v2560
    %v2599 = vrot.slane %v2560, 4
    %v2600 = vsel %vm542, %v2584, %v2599
    %v2601 = vrot.slane %v2590, 4
    %v2602 = vsel %vm542, %v2601, %v2586
    %v2603 = vrot.slane %v2586, 4
    %v2604 = vsel %vm542, %v2590, %v2603
    %v2606 = vunpack.c.l.s4 1983009808
    %v2607 = vunpack.c.0.s8 %v2606
    %v2608 = vperm.slane %v2602, %v2607
    %v2610 = vunpack.c.l.s4 1983009808
    %v2611 = vunpack.c.0.s8 %v2610
    %v2612 = vperm.slane %v2604, %v2611
    %v2613 = vrot.slane %v2592, 4
    %v2614 = vsel %vm542, %v2613, %v2588
    %v2615 = vrot.slane %v2588, 4
    %v2616 = vsel %vm542, %v2592, %v2615
    %v2618 = vunpack.c.l.s4 1983009808
    %v2619 = vunpack.c.0.s8 %v2618
    %v2620 = vperm.slane %v2614, %v2619
    %v2622 = vunpack.c.l.s4 1983009808
    %v2623 = vunpack.c.0.s8 %v2622
    %v2624 = vperm.slane %v2616, %v2623
    %v2625 = vrot.slane %v2598, 4
    %v2626 = vsel %vm542, %v2625, %v2594
    %v2627 = vrot.slane %v2594, 4
    %v2628 = vsel %vm542, %v2598, %v2627
    %v2630 = vunpack.c.l.s4 1983009808
    %v2631 = vunpack.c.0.s8 %v2630
    %v2632 = vperm.slane %v2626, %v2631
    %v2634 = vunpack.c.l.s4 1983009808
    %v2635 = vunpack.c.0.s8 %v2634
    %v2636 = vperm.slane %v2628, %v2635
    %v2637 = vrot.slane %v2600, 4
    %v2638 = vsel %vm542, %v2637, %v2596
    %v2639 = vrot.slane %v2596, 4
    %v2640 = vsel %vm542, %v2600, %v2639
    %v2642 = vunpack.c.l.s4 1983009808
    %v2643 = vunpack.c.0.s8 %v2642
    %v2644 = vperm.slane %v2638, %v2643
    %v2646 = vunpack.c.l.s4 1983009808
    %v2647 = vunpack.c.0.s8 %v2646
    %v2648 = vperm.slane %v2640, %v2647
    %v2649 = vrot.slane %v2620, 4
    %v2650 = vsel %vm542, %v2649, %v2608
    %v2651 = vrot.slane %v2608, 4
    %v2652 = vsel %vm542, %v2620, %v2651
    %v2654 = vunpack.c.l.s4 1934713408
    %v2655 = vunpack.c.0.s8 %v2654
    %v2656 = vperm.slane %v2650, %v2655
    %v2658 = vunpack.c.l.s4 1934713408
    %v2659 = vunpack.c.0.s8 %v2658
    %v2660 = vperm.slane %v2652, %v2659
    %v2661 = vrot.slane %v2624, 4
    %v2662 = vsel %vm542, %v2661, %v2612
    %v2663 = vrot.slane %v2612, 4
    %v2664 = vsel %vm542, %v2624, %v2663
    %v2666 = vunpack.c.l.s4 1934713408
    %v2667 = vunpack.c.0.s8 %v2666
    %v2668 = vperm.slane %v2662, %v2667
    %v2670 = vunpack.c.l.s4 1934713408
    %v2671 = vunpack.c.0.s8 %v2670
    %v2672 = vperm.slane %v2664, %v2671
    %v2673 = vrot.slane %v2644, 4
    %v2674 = vsel %vm542, %v2673, %v2632
    %v2675 = vrot.slane %v2632, 4
    %v2676 = vsel %vm542, %v2644, %v2675
    %v2678 = vunpack.c.l.s4 1934713408
    %v2679 = vunpack.c.0.s8 %v2678
    %v2680 = vperm.slane %v2674, %v2679
    %v2682 = vunpack.c.l.s4 1934713408
    %v2683 = vunpack.c.0.s8 %v2682
    %v2684 = vperm.slane %v2676, %v2683
    %v2685 = vrot.slane %v2648, 4
    %v2686 = vsel %vm542, %v2685, %v2636
    %v2687 = vrot.slane %v2636, 4
    %v2688 = vsel %vm542, %v2648, %v2687
    %v2690 = vunpack.c.l.s4 1934713408
    %v2691 = vunpack.c.0.s8 %v2690
    %v2692 = vperm.slane %v2686, %v2691
    %v2694 = vunpack.c.l.s4 1934713408
    %v2695 = vunpack.c.0.s8 %v2694
    %v2696 = vperm.slane %v2688, %v2695
    %v2697 = vrot.slane %v2680, 4
    %v2698 = vsel %vm542, %v2697, %v2656
    %v2699 = vrot.slane %v2656, 4
    %v2700 = vsel %vm542, %v2680, %v2699
    %v2701 = vrot.slane %v2684, 4
    %v2702 = vsel %vm542, %v2701, %v2660
    %v2703 = vrot.slane %v2660, 4
    %v2704 = vsel %vm542, %v2684, %v2703
    %v2705 = vrot.slane %v2692, 4
    %v2706 = vsel %vm542, %v2705, %v2668
    %v2707 = vrot.slane %v2668, 4
    %v2708 = vsel %vm542, %v2692, %v2707
    %v2709 = vrot.slane %v2696, 4
    %v2710 = vsel %vm542, %v2709, %v2672
    %v2711 = vrot.slane %v2672, 4
    %v2712 = vsel %vm542, %v2696, %v2711
    %2714 = vrot.lane.b32.xlu0 %v2700, 8
    %v2715 = vpop.permute.xlu0 %2714
    %2718 = vrot.lane.b32.xlu0 %v2702, 16
    %v2719 = vpop.permute.xlu0 %2718
    %2722 = vrot.lane.b32.xlu0 %v2704, 24
    %v2723 = vpop.permute.xlu0 %2722
    %2726 = vrot.lane.b32.xlu0 %v2706, 32
    %v2727 = vpop.permute.xlu0 %2726
    %2730 = vrot.lane.b32.xlu0 %v2708, 40
    %v2731 = vpop.permute.xlu0 %2730
    %2734 = vrot.lane.b32.xlu0 %v2710, 48
    %v2735 = vpop.permute.xlu0 %2734
    %2738 = vrot.lane.b32.xlu0 %v2712, 56
    %v2739 = vpop.permute.xlu0 %2738
    %v2741 = vsel %vm1407, %v2698, %v2715
    %vm2742 = vcmask 130048
    %v2743 = vsel %vm2742, %v2741, %v2719
    %vm2744 = vcmask 195584
    %v2745 = vsel %vm2744, %v2743, %v2723
    %vm2746 = vcmask 261120
    %v2747 = vsel %vm2746, %v2745, %v2727
    %vm2748 = vcmask 326656
    %v2749 = vsel %vm2748, %v2747, %v2731
    %vm2750 = vcmask 392192
    %v2751 = vsel %vm2750, %v2749, %v2735
    %vm2752 = vcmask 457728
    %v2753 = vsel %vm2752, %v2751, %v2739
    %v2754 = vpack.c.bf16 %v2753, %v2753
    %v2755 = vld [vmem:[#allocation10] sm:$0xf]
    %v2756 = vld [vmem:[#allocation10 + $0x4] sm:$0xf]
    %v2757 = vld [vmem:[#allocation10 + $0x8] sm:$0xf]
    %v2758 = vld [vmem:[#allocation10 + $0xc] sm:$0xf]
    %v2759 = vld [vmem:[#allocation10 + $0x10] sm:$0xf]
    %v2760 = vld [vmem:[#allocation10 + $0x14] sm:$0xf]
    %v2761 = vld [vmem:[#allocation10 + $0x18] sm:$0xf]
    %v2762 = vld [vmem:[#allocation10 + $0x1c] sm:$0xf]
    %v2763 = vperm.slane %v136, 1
    %v2772 = vunpack.c.l.b16 %v2755
    %v2773 = vunpack.c.l.b16 %v2756
    %v2774 = vunpack.c.l.b16 %v2757
    %v2775 = vunpack.c.l.b16 %v2758
    %v2776 = vunpack.c.l.b16 %v2759
    %v2777 = vunpack.c.l.b16 %v2760
    %v2778 = vunpack.c.l.b16 %v2761
    %v2779 = vunpack.c.l.b16 %v2762
    %v2780 = vpack.c.b16 %v2773, %v2772
    %v2781 = vpack.c.b16 %v2775, %v2774
    %v2782 = vpack.c.b16 %v2777, %v2776
    %v2783 = vpack.c.b16 %v2779, %v2778
    %v2789 = vsel %vm234, %v2754, 0
    %2791 = vmatpush.bf16.msra.mxu0 0
    %2792 = vmatpush.bf16.msra.mxu0 0
    %2793 = vmatpush.bf16.msra.mxu0 0
    %2794 = vmatpush.bf16.msra.mxu0 0
    %2795 = vmatpush.bf16.msra.mxu0 %v2783
    %2796 = vmatpush.bf16.msra.mxu0 %v2782
    %2797 = vmatpush.bf16.msra.mxu0 %v2781
    %2798 = vmatpush.bf16.msra.mxu0 %v2780
    %2799 = vmatmul.bf16.gmra.mxu0 %v2789
    %v2800 = vpop.f32.mrf.mxu0
    %v2801 = vadd.f32 %v2763, %v2800
    %v2802 = vpop.f32.mrf.mxu0
    %2803 = vdwg.mxu0
    %v2804 = vadd.f32 %v2801, %v177
    %v2805 = vpack.c.bf16 %v2804, %v2804
    %v2806 = vld [vmem:[#allocation11] sm:$0xf]
    %v2807 = vld [vmem:[#allocation11 + $0x4] sm:$0xf]
    %v2808 = vld [vmem:[#allocation11 + $0x8] sm:$0xf]
    %v2809 = vld [vmem:[#allocation11 + $0xc] sm:$0xf]
    %v2810 = vld [vmem:[#allocation11 + $0x10] sm:$0xf]
    %v2811 = vld [vmem:[#allocation11 + $0x14] sm:$0xf]
    %v2812 = vld [vmem:[#allocation11 + $0x18] sm:$0xf]
    %v2813 = vld [vmem:[#allocation11 + $0x1c] sm:$0xf]
    %v2814 = vperm.slane %v136, 2
    %v2823 = vunpack.c.l.b16 %v2806
    %v2824 = vunpack.c.l.b16 %v2807
    %v2825 = vunpack.c.l.b16 %v2808
    %v2826 = vunpack.c.l.b16 %v2809
    %v2827 = vunpack.c.l.b16 %v2810
    %v2828 = vunpack.c.l.b16 %v2811
    %v2829 = vunpack.c.l.b16 %v2812
    %v2830 = vunpack.c.l.b16 %v2813
    %v2831 = vpack.c.b16 %v2824, %v2823
    %v2832 = vpack.c.b16 %v2826, %v2825
    %v2833 = vpack.c.b16 %v2828, %v2827
    %v2834 = vpack.c.b16 %v2830, %v2829
    %v2840 = vsel %vm234, %v2805, 0
    %2842 = vmatpush.bf16.msra.mxu0 0
    %2843 = vmatpush.bf16.msra.mxu0 0
    %2844 = vmatpush.bf16.msra.mxu0 0
    %2845 = vmatpush.bf16.msra.mxu0 0
    %2846 = vmatpush.bf16.msra.mxu0 %v2834
    %2847 = vmatpush.bf16.msra.mxu0 %v2833
    %2848 = vmatpush.bf16.msra.mxu0 %v2832
    %2849 = vmatpush.bf16.msra.mxu0 %v2831
    %2850 = vmatmul.bf16.gmra.mxu0 %v2840
    %v2851 = vpop.f32.mrf.mxu0
    %v2852 = vadd.f32 %v2814, %v2851
    %v2853 = vpop.f32.mrf.mxu0
    %2854 = vdwg.mxu0
    %2855 = vst.msk [vmem:[#allocation14] sm:$0xff] %vm234, %v2852
    // Predicated region
    $region62: #{tpu_custom_call.1} parent=1 // pred_check
      _
    $region63: #{tpu_custom_call.1} parent=1 // pred_check_branch
      %2857 = sbr.rel (0) target = $region65
    $region64: #{tpu_custom_call.1} parent=1 // pred_region
      %2859 = vsyncadd [#allocation4], 0
      %s2861 = sshll.u32 [#allocation14], 4
      %s2862 = int_to_ptr.vmem [resolvable:$true] %s2861
      %s2863 = sshll.u32 %s8, 4
      %s2864 = int_to_ptr.hbm [resolvable:$true] %s2863
      %2866 = dma.vmem_to_hbm [thread:$0]  %s2862, 128, %s2864, [#allocation4]
    $region65: #{tpu_custom_call.1} parent=1 // pred_fallthru
      _
    // Predicated region
    $region66: #{tpu_custom_call.1} parent=1 // pred_check
      _
    $region67: #{tpu_custom_call.1} parent=1 // pred_check_branch
      %2868 = sbr.rel (0) target = $region69
    $region68: #{tpu_custom_call.1} parent=1 // pred_region
      %2870 = dma.done [#allocation4], 128
    $region69: #{tpu_custom_call.1} parent=1 // pred_fallthru
      _
    %2871 = vsyncpa [#allocation3], 1
    %2872 = vsyncpa [#allocation6], 1
    %2873 = vsyncpa [#allocation9], 1
    %2874 = vsyncpa [#allocation12], 1
    %2875 = vsyncpa [#allocation4], 1

</llo_original>
